<compile_context>
chip_gen: v5e
topology: v5e:2x2
jax: 0.10.0
libtpu: 0.0.40
codegen_flags: <defaults>
</compile_context>

<pallas_src>
import functools

import jax
import jax.numpy as jnp
from jax import lax
from jax.experimental import pallas as pl
from jax.experimental.pallas import tpu as pltpu  # noqa: F401  (TPU memory spaces if needed)

# ----------------------------- model config ---------------------------------
B = 2        # batch
C = 3        # image channels
IMG = 16     # image height = width
PATCH = 8    # patch size
NP = (IMG // PATCH) ** 2            # 4 patches / image
PDIM = C * PATCH * PATCH            # 192 flattened patch dim
D = 32       # hidden size
FF = 128     # MLP hidden
T = 8        # decoder sequence length
V = 64       # vocab size
VPAD = 128   # vocab padded to a full 128-lane vreg

_NEG_INF = -1e30  # f32-safe large negative (do NOT reuse if dtype becomes bf16)


def _softmax(x):
    m = jnp.max(x, axis=-1, keepdims=True)
    e = jnp.exp(x - m)
    return e / jnp.sum(e, axis=-1, keepdims=True)


# ----------------------------- fused Pallas kernel ---------------------------
def fused_trocr_kernel(patches_ref, tok_ref, labels_ref, rand_ref,
                       enc_wp_ref, enc_bp_ref, enc_pos_ref, enc_wqkv_ref, enc_wo_ref,
                       enc_w1_ref, enc_b1_ref, enc_w2_ref, enc_b2_ref,
                       dec_pos_ref, dec_sqkv_ref, dec_so_ref, dec_cq_ref,
                       dec_ckv_ref, dec_co_ref,
                       dec_w1_ref, dec_b1_ref, dec_w2_ref, dec_b2_ref,
                       lm_w_ref, lm_b_ref,
                       loss_ref, logits_ref,
                       *, batch, npatch, tlen, dmodel, drop_rate):
    f32 = jnp.float32
    d = dmodel
    scale = 1.0 / (d ** 0.5)

    # ============================ encoder ====================================
    x = patches_ref[...]                                               # (B*NP, PDIM)
    h2 = jnp.dot(x, enc_wp_ref[...], preferred_element_type=f32) + enc_bp_ref[...]
    h = h2.reshape(batch, npatch, d) + enc_pos_ref[...][None]          # (B, NP, D)

    # self-attention (packed QKV, no transposes: contract last axes)
    hf = h.reshape(batch * npatch, d)
    qkv = jnp.dot(hf, enc_wqkv_ref[...], preferred_element_type=f32)   # (B*NP, 3D)
    q = qkv[:, :d].reshape(batch, npatch, d)
    k = qkv[:, d:2 * d].reshape(batch, npatch, d)
    v = qkv[:, 2 * d:].reshape(batch, npatch, d)
    s = jnp.einsum('bqd,bkd->bqk', q, k, preferred_element_type=f32) * scale
    ctx = jnp.einsum('bqk,bkd->bqd', _softmax(s), v, preferred_element_type=f32)
    h = h + jnp.dot(ctx.reshape(batch * npatch, d), enc_wo_ref[...],
                    preferred_element_type=f32).reshape(batch, npatch, d)

    # MLP
    hf = h.reshape(batch * npatch, d)
    ff = jax.nn.gelu(
        jnp.dot(hf, enc_w1_ref[...], preferred_element_type=f32) + enc_b1_ref[...],
        approximate=True)
    h = h + (jnp.dot(ff, enc_w2_ref[...], preferred_element_type=f32)
             + enc_b2_ref[...]).reshape(batch, npatch, d)
    enc_h = h                                                          # stays on-chip

    # ============================ decoder ====================================
    g2 = tok_ref[...]                                                  # (B*T, D)
    g = g2.reshape(batch, tlen, d) + dec_pos_ref[...][None]            # (B, T, D)

    # causal self-attention
    gf = g.reshape(batch * tlen, d)
    qkv = jnp.dot(gf, dec_sqkv_ref[...], preferred_element_type=f32)   # (B*T, 3D)
    q = qkv[:, :d].reshape(batch, tlen, d)
    k = qkv[:, d:2 * d].reshape(batch, tlen, d)
    v = qkv[:, 2 * d:].reshape(batch, tlen, d)
    s = jnp.einsum('bqd,bkd->bqk', q, k, preferred_element_type=f32) * scale
    row = lax.broadcasted_iota(jnp.int32, (tlen, tlen), 0)
    col = lax.broadcasted_iota(jnp.int32, (tlen, tlen), 1)
    s = jnp.where((col <= row)[None], s, _NEG_INF)
    ctx = jnp.einsum('bqk,bkd->bqd', _softmax(s), v, preferred_element_type=f32)
    g = g + jnp.dot(ctx.reshape(batch * tlen, d), dec_so_ref[...],
                    preferred_element_type=f32).reshape(batch, tlen, d)

    # cross-attention over encoder states (packed KV)
    gf = g.reshape(batch * tlen, d)
    q = jnp.dot(gf, dec_cq_ref[...], preferred_element_type=f32).reshape(batch, tlen, d)
    ekv = jnp.dot(enc_h.reshape(batch * npatch, d), dec_ckv_ref[...],
                  preferred_element_type=f32)                          # (B*NP, 2D)
    k = ekv[:, :d].reshape(batch, npatch, d)
    v = ekv[:, d:].reshape(batch, npatch, d)
    s = jnp.einsum('bqd,bkd->bqk', q, k, preferred_element_type=f32) * scale
    ctx = jnp.einsum('bqk,bkd->bqd', _softmax(s), v, preferred_element_type=f32)
    g = g + jnp.dot(ctx.reshape(batch * tlen, d), dec_co_ref[...],
                    preferred_element_type=f32).reshape(batch, tlen, d)

    # MLP
    gf = g.reshape(batch * tlen, d)
    ff = jax.nn.gelu(
        jnp.dot(gf, dec_w1_ref[...], preferred_element_type=f32) + dec_b1_ref[...],
        approximate=True)
    gf = gf + jnp.dot(ff, dec_w2_ref[...], preferred_element_type=f32) + dec_b2_ref[...]

    # LM head -> lane-dense padded logits (B*T, VPAD)
    logits = jnp.dot(gf, lm_w_ref[...], preferred_element_type=f32) + lm_b_ref[...]

    # ============================ loss (pre-dropout) =========================
    bt = batch * tlen
    m = jnp.max(logits, axis=-1, keepdims=True)
    lse = m + jnp.log(jnp.sum(jnp.exp(logits - m), axis=-1, keepdims=True))
    logp = logits - lse
    labels = labels_ref[...]                                           # (B*T, 1) int32
    ids = lax.broadcasted_iota(jnp.int32, (bt, logits.shape[-1]), 1)
    onehot = (ids == labels).astype(f32)
    nll = jnp.sum(onehot * (-logp), axis=-1, keepdims=True)            # (B*T, 1)
    valid = (labels >= 0).astype(f32)                                  # ignore_index<0 masked
    total = jnp.sum(nll * valid, axis=0, keepdims=True)                # (1, 1)
    count = jnp.sum(valid, axis=0, keepdims=True)
    loss_ref[...] = total / jnp.maximum(count, 1.0)

    # ============================ dropout on logits ==========================
    # (matches the torch wrapper: dropout applied AFTER the base model's loss)
    if drop_rate > 0.0:
        keep = (rand_ref[...] >= drop_rate).astype(f32)
        logits_ref[...] = logits * keep * (1.0 / (1.0 - drop_rate))
    else:
        logits_ref[...] = logits


# ----------------------------- module-level forward ---------------------------
@functools.partial(jax.jit, static_argnames=("dropout_rate",))
def trocr_forward(params, pixel_values, labels, dropout_rate, rng_key):
    bsz, c, hh, ww = pixel_values.shape
    npatch = (hh // PATCH) * (ww // PATCH)
    tlen = labels.shape[1]

    # patchify NCHW -> (B*Np, C*ph*pw)  (equivalent to the stride-PATCH conv)
    patches = pixel_values.reshape(bsz, c, hh // PATCH, PATCH, ww // PATCH, PATCH)
    patches = patches.transpose(0, 2, 4, 1, 3, 5).reshape(
        bsz * npatch, c * PATCH * PATCH).astype(jnp.float32)

    labels = labels.astype(jnp.int32)
    safe = jnp.clip(labels, 0, params["tok_emb"].shape[0] - 1)
    tok = jnp.take(params["tok_emb"], safe, axis=0).reshape(bsz * tlen, -1)   # gather glue
    labels2d = labels.reshape(bsz * tlen, 1)

    # dropout uniforms generated host-side-of-kernel (portable across TPU HW and
    # interpret mode).  TODO(synk): switch to pltpu.prng_random_bits on real HW.
    rand = jax.random.uniform(rng_key, (bsz * tlen, VPAD), dtype=jnp.float32)

    kern = functools.partial(fused_trocr_kernel, batch=bsz, npatch=npatch,
                             tlen=tlen, dmodel=D, drop_rate=float(dropout_rate))
    loss, logits_pad = pl.pallas_call(
        kern,
        out_shape=(jax.ShapeDtypeStruct((1, 1), jnp.float32),
                   jax.ShapeDtypeStruct((bsz * tlen, VPAD), jnp.float32)),
    )(patches, tok, labels2d, rand,
      params["enc_wp"], params["enc_bp"], params["enc_pos"],
      params["enc_wqkv"], params["enc_wo"],
      params["enc_w1"], params["enc_b1"], params["enc_w2"], params["enc_b2"],
      params["dec_pos"], params["dec_sqkv"], params["dec_so"],
      params["dec_cq"], params["dec_ckv"], params["dec_co"],
      params["dec_w1"], params["dec_b1"], params["dec_w2"], params["dec_b2"],
      params["lm_w_pad"], params["lm_b_pad"])

    logits = logits_pad[:, :V].reshape(bsz, tlen, V)
    return loss[0, 0], logits


class RegularizedTrOCRPallas:
    """Pallas counterpart of RegularizedTrOCR (training-mode forward)."""

    def __init__(self, params, dropout_rate=0.1):
        self.params = params
        self.current_dropout_rate = dropout_rate

    def set_dropout(self, dropout_rate):
        self.current_dropout_rate = dropout_rate

    def __call__(self, pixel_values, labels, training=True, rng_key=None):
        rate = self.current_dropout_rate if training else 0.0
        if rng_key is None:
            rng_key = jax.random.PRNGKey(0)
        return trocr_forward(self.params, pixel_values, labels, float(rate), rng_key)

    # TODO(synk): generate() (autoregressive beam/greedy decode loop) is host-side
    # control flow in HF and is not implemented as a Pallas kernel here.


# ----------------------------- parameter init --------------------------------
def init_params(key):
    keys = jax.random.split(key, 24)

    def w(i, shape, scale=0.02):
        return (scale * jax.random.normal(keys[i], shape)).astype(jnp.float32)

    z = lambda shape: jnp.zeros(shape, jnp.float32)

    lm_w = w(20, (D, V))
    lm_b = z((1, V))
    # pad vocab to 128 lanes; padded bias columns get a huge negative so they
    # never influence softmax / logsumexp / argmax.
    lm_w_pad = jnp.concatenate([lm_w, jnp.zeros((D, VPAD - V), jnp.float32)], axis=1)
    lm_b_pad = jnp.concatenate([lm_b, jnp.full((1, VPAD - V), _NEG_INF, jnp.float32)], axis=1)

    return dict(
        enc_wp=w(0, (PDIM, D)), enc_bp=z((1, D)), enc_pos=w(1, (NP, D)),
        enc_wqkv=jnp.concatenate([w(2, (D, D)), w(3, (D, D)), w(4, (D, D))], axis=1),
        enc_wo=w(5, (D, D)),
        enc_w1=w(6, (D, FF)), enc_b1=z((1, FF)), enc_w2=w(7, (FF, D)), enc_b2=z((1, D)),
        tok_emb=w(8, (V, D)), dec_pos=w(9, (T, D)),
        dec_sqkv=jnp.concatenate([w(10, (D, D)), w(11, (D, D)), w(12, (D, D))], axis=1),
        dec_so=w(13, (D, D)),
        dec_cq=w(14, (D, D)),
        dec_ckv=jnp.concatenate([w(15, (D, D)), w(16, (D, D))], axis=1),
        dec_co=w(17, (D, D)),
        dec_w1=w(18, (D, FF)), dec_b1=z((1, FF)), dec_w2=w(19, (FF, D)), dec_b2=z((1, D)),
        lm_w_pad=lm_w_pad, lm_b_pad=lm_b_pad,
    )


if __name__ == "__main__":
    key = jax.random.PRNGKey(0)
    kp, kx, kl, kd = jax.random.split(key, 4)

    params = init_params(kp)
    model = RegularizedTrOCRPallas(params, dropout_rate=0.1)

    pixel_values = jax.random.normal(kx, (B, C, IMG, IMG), dtype=jnp.float32)
    labels = jax.random.randint(kl, (B, T), 0, V, dtype=jnp.int32)

    loss, logits = model(pixel_values, labels, training=True, rng_key=kd)
    jax.block_until_ready((loss, logits))
    assert logits.shape == (B, T, V)
    assert bool(jnp.isfinite(loss))
    print("KERNEL_OK")
</pallas_src>

<mosaic_0001>
module attributes {stable_mosaic.version = 11 : i64} {
  func.func @fused_trocr_kernel(%arg0: memref<8x192xf32, #tpu.memory_space<vmem>>, %arg1: memref<16x32xf32, #tpu.memory_space<vmem>>, %arg2: memref<16x1xi32, #tpu.memory_space<vmem>>, %arg3: memref<16x128xf32, #tpu.memory_space<vmem>>, %arg4: memref<192x32xf32, #tpu.memory_space<vmem>>, %arg5: memref<1x32xf32, #tpu.memory_space<vmem>>, %arg6: memref<4x32xf32, #tpu.memory_space<vmem>>, %arg7: memref<32x96xf32, #tpu.memory_space<vmem>>, %arg8: memref<32x32xf32, #tpu.memory_space<vmem>>, %arg9: memref<32x128xf32, #tpu.memory_space<vmem>>, %arg10: memref<1x128xf32, #tpu.memory_space<vmem>>, %arg11: memref<128x32xf32, #tpu.memory_space<vmem>>, %arg12: memref<1x32xf32, #tpu.memory_space<vmem>>, %arg13: memref<8x32xf32, #tpu.memory_space<vmem>>, %arg14: memref<32x96xf32, #tpu.memory_space<vmem>>, %arg15: memref<32x32xf32, #tpu.memory_space<vmem>>, %arg16: memref<32x32xf32, #tpu.memory_space<vmem>>, %arg17: memref<32x64xf32, #tpu.memory_space<vmem>>, %arg18: memref<32x32xf32, #tpu.memory_space<vmem>>, %arg19: memref<32x128xf32, #tpu.memory_space<vmem>>, %arg20: memref<1x128xf32, #tpu.memory_space<vmem>>, %arg21: memref<128x32xf32, #tpu.memory_space<vmem>>, %arg22: memref<1x32xf32, #tpu.memory_space<vmem>>, %arg23: memref<32x128xf32, #tpu.memory_space<vmem>>, %arg24: memref<1x128xf32, #tpu.memory_space<vmem>>, %arg25: memref<1x1xf32, #tpu.memory_space<vmem>>, %arg26: memref<16x128xf32, #tpu.memory_space<vmem>>) attributes {dimension_semantics = [], scalar_prefetch = 0 : i64, scratch_operands = 0 : i64, tpu.core_type = #tpu.core_type<tc>} {
    %c0 = arith.constant 0 : index
    %c0_0 = arith.constant 0 : index
    %0 = vector.load %arg0[%c0, %c0_0] : memref<8x192xf32, #tpu.memory_space<vmem>>, vector<8x192xf32>
    %c0_1 = arith.constant 0 : index
    %c0_2 = arith.constant 0 : index
    %1 = vector.load %arg4[%c0_1, %c0_2] : memref<192x32xf32, #tpu.memory_space<vmem>>, vector<192x32xf32>
    %cst = arith.constant dense<0.000000e+00> : vector<8x32xf32>
    %2 = tpu.matmul %0, %1, %cst {dimension_numbers = #tpu.dot_dimension_numbers<[1], [0], [0], [1], [0, 0, 1, 1], [], []>} : vector<8x192xf32>, vector<192x32xf32>, vector<8x32xf32> -> vector<8x32xf32>
    %c0_3 = arith.constant 0 : index
    %c0_4 = arith.constant 0 : index
    %3 = vector.load %arg5[%c0_3, %c0_4] : memref<1x32xf32, #tpu.memory_space<vmem>>, vector<1x32xf32>
    %4 = vector.broadcast %3 : vector<1x32xf32> to vector<8x32xf32>
    %5 = arith.addf %2, %4 : vector<8x32xf32>
    %6 = vector.shape_cast %5 : vector<8x32xf32> to vector<2x4x32xf32>
    %c0_5 = arith.constant 0 : index
    %c0_6 = arith.constant 0 : index
    %7 = vector.load %arg6[%c0_5, %c0_6] : memref<4x32xf32, #tpu.memory_space<vmem>>, vector<4x32xf32>
    %8 = vector.shape_cast %7 : vector<4x32xf32> to vector<1x4x32xf32>
    %9 = vector.broadcast %8 : vector<1x4x32xf32> to vector<2x4x32xf32>
    %10 = arith.addf %6, %9 : vector<2x4x32xf32>
    %11 = vector.shape_cast %10 : vector<2x4x32xf32> to vector<8x32xf32>
    %c0_7 = arith.constant 0 : index
    %c0_8 = arith.constant 0 : index
    %12 = vector.load %arg7[%c0_7, %c0_8] : memref<32x96xf32, #tpu.memory_space<vmem>>, vector<32x96xf32>
    %cst_9 = arith.constant dense<0.000000e+00> : vector<8x96xf32>
    %13 = tpu.matmul %11, %12, %cst_9 {dimension_numbers = #tpu.dot_dimension_numbers<[1], [0], [0], [1], [0, 0, 1, 1], [], []>} : vector<8x32xf32>, vector<32x96xf32>, vector<8x96xf32> -> vector<8x96xf32>
    %14 = vector.extract_strided_slice %13 {offsets = [0, 0], sizes = [8, 32], strides = [1, 1]} : vector<8x96xf32> to vector<8x32xf32>
    %15 = vector.shape_cast %14 : vector<8x32xf32> to vector<2x4x32xf32>
    %16 = vector.extract_strided_slice %13 {offsets = [0, 32], sizes = [8, 32], strides = [1, 1]} : vector<8x96xf32> to vector<8x32xf32>
    %17 = vector.shape_cast %16 : vector<8x32xf32> to vector<2x4x32xf32>
    %18 = vector.extract_strided_slice %13 {offsets = [0, 64], sizes = [8, 32], strides = [1, 1]} : vector<8x96xf32> to vector<8x32xf32>
    %19 = vector.shape_cast %18 : vector<8x32xf32> to vector<2x4x32xf32>
    "tpu.trace_start"() <{level = 10 : i32, message = "bqd,bkd->bqk"}> : () -> ()
    %cst_10 = arith.constant dense<0.000000e+00> : vector<2x4x4xf32>
    %20 = tpu.matmul %15, %17, %cst_10 {dimension_numbers = #tpu.dot_dimension_numbers<[2], [2], [1], [1], [0, 0, 0, 1, 1, 1], [0], [0]>} : vector<2x4x32xf32>, vector<2x4x32xf32>, vector<2x4x4xf32> -> vector<2x4x4xf32>
    "tpu.trace_stop"() : () -> ()
    %cst_11 = arith.constant 0.176776692 : f32
    %21 = vector.broadcast %cst_11 : f32 to vector<2x4x4xf32>
    %22 = arith.mulf %20, %21 : vector<2x4x4xf32>
    %cst_12 = arith.constant dense<0xFF800000> : vector<2x4xf32>
    %23 = vector.multi_reduction <maximumf>, %22, %cst_12 [2] : vector<2x4x4xf32> to vector<2x4xf32>
    %24 = vector.shape_cast %23 : vector<2x4xf32> to vector<2x4x1xf32>
    %25 = vector.broadcast %24 : vector<2x4x1xf32> to vector<2x4x4xf32>
    %26 = arith.subf %22, %25 : vector<2x4x4xf32>
    %27 = math.exp %26 : vector<2x4x4xf32>
    %cst_13 = arith.constant dense<0.000000e+00> : vector<2x4xf32>
    %28 = vector.multi_reduction <add>, %27, %cst_13 [2] : vector<2x4x4xf32> to vector<2x4xf32>
    %29 = vector.shape_cast %28 : vector<2x4xf32> to vector<2x4x1xf32>
    %30 = vector.broadcast %29 : vector<2x4x1xf32> to vector<2x4x4xf32>
    %31 = arith.divf %27, %30 : vector<2x4x4xf32>
    "tpu.trace_start"() <{level = 10 : i32, message = "bqk,bkd->bqd"}> : () -> ()
    %cst_14 = arith.constant dense<0.000000e+00> : vector<2x4x32xf32>
    %32 = tpu.matmul %31, %19, %cst_14 {dimension_numbers = #tpu.dot_dimension_numbers<[2], [1], [1], [2], [0, 0, 0, 1, 1, 2], [0], [0]>} : vector<2x4x4xf32>, vector<2x4x32xf32>, vector<2x4x32xf32> -> vector<2x4x32xf32>
    "tpu.trace_stop"() : () -> ()
    %33 = vector.shape_cast %32 : vector<2x4x32xf32> to vector<8x32xf32>
    %c0_15 = arith.constant 0 : index
    %c0_16 = arith.constant 0 : index
    %34 = vector.load %arg8[%c0_15, %c0_16] : memref<32x32xf32, #tpu.memory_space<vmem>>, vector<32x32xf32>
    %cst_17 = arith.constant dense<0.000000e+00> : vector<8x32xf32>
    %35 = tpu.matmul %33, %34, %cst_17 {dimension_numbers = #tpu.dot_dimension_numbers<[1], [0], [0], [1], [0, 0, 1, 1], [], []>} : vector<8x32xf32>, vector<32x32xf32>, vector<8x32xf32> -> vector<8x32xf32>
    %36 = vector.shape_cast %35 : vector<8x32xf32> to vector<2x4x32xf32>
    %37 = arith.addf %10, %36 : vector<2x4x32xf32>
    %38 = vector.shape_cast %37 : vector<2x4x32xf32> to vector<8x32xf32>
    %c0_18 = arith.constant 0 : index
    %c0_19 = arith.constant 0 : index
    %39 = vector.load %arg9[%c0_18, %c0_19] : memref<32x128xf32, #tpu.memory_space<vmem>>, vector<32x128xf32>
    %cst_20 = arith.constant dense<0.000000e+00> : vector<8x128xf32>
    %40 = tpu.matmul %38, %39, %cst_20 {dimension_numbers = #tpu.dot_dimension_numbers<[1], [0], [0], [1], [0, 0, 1, 1], [], []>} : vector<8x32xf32>, vector<32x128xf32>, vector<8x128xf32> -> vector<8x128xf32>
    %c0_21 = arith.constant 0 : index
    %c0_22 = arith.constant 0 : index
    %41 = vector.load %arg10[%c0_21, %c0_22] : memref<1x128xf32, #tpu.memory_space<vmem>>, vector<1x128xf32>
    %42 = vector.broadcast %41 : vector<1x128xf32> to vector<8x128xf32>
    %43 = arith.addf %40, %42 : vector<8x128xf32>
    %44 = arith.mulf %43, %43 : vector<8x128xf32>
    %45 = arith.mulf %43, %44 : vector<8x128xf32>
    %cst_23 = arith.constant 4.471500e-02 : f32
    %46 = vector.broadcast %cst_23 : f32 to vector<8x128xf32>
    %47 = arith.mulf %46, %45 : vector<8x128xf32>
    %48 = arith.addf %43, %47 : vector<8x128xf32>
    %cst_24 = arith.constant 0.797884583 : f32
    %49 = vector.broadcast %cst_24 : f32 to vector<8x128xf32>
    %50 = arith.mulf %49, %48 : vector<8x128xf32>
    %51 = math.tanh %50 : vector<8x128xf32>
    %cst_25 = arith.constant 1.000000e+00 : f32
    %52 = vector.broadcast %cst_25 : f32 to vector<8x128xf32>
    %53 = arith.addf %52, %51 : vector<8x128xf32>
    %cst_26 = arith.constant 5.000000e-01 : f32
    %54 = vector.broadcast %cst_26 : f32 to vector<8x128xf32>
    %55 = arith.mulf %54, %53 : vector<8x128xf32>
    %56 = arith.mulf %43, %55 : vector<8x128xf32>
    %c0_27 = arith.constant 0 : index
    %c0_28 = arith.constant 0 : index
    %57 = vector.load %arg11[%c0_27, %c0_28] : memref<128x32xf32, #tpu.memory_space<vmem>>, vector<128x32xf32>
    %cst_29 = arith.constant dense<0.000000e+00> : vector<8x32xf32>
    %58 = tpu.matmul %56, %57, %cst_29 {dimension_numbers = #tpu.dot_dimension_numbers<[1], [0], [0], [1], [0, 0, 1, 1], [], []>} : vector<8x128xf32>, vector<128x32xf32>, vector<8x32xf32> -> vector<8x32xf32>
    %c0_30 = arith.constant 0 : index
    %c0_31 = arith.constant 0 : index
    %59 = vector.load %arg12[%c0_30, %c0_31] : memref<1x32xf32, #tpu.memory_space<vmem>>, vector<1x32xf32>
    %60 = vector.broadcast %59 : vector<1x32xf32> to vector<8x32xf32>
    %61 = arith.addf %58, %60 : vector<8x32xf32>
    %62 = vector.shape_cast %61 : vector<8x32xf32> to vector<2x4x32xf32>
    %63 = arith.addf %37, %62 : vector<2x4x32xf32>
    %c0_32 = arith.constant 0 : index
    %c0_33 = arith.constant 0 : index
    %64 = vector.load %arg1[%c0_32, %c0_33] : memref<16x32xf32, #tpu.memory_space<vmem>>, vector<16x32xf32>
    %65 = vector.shape_cast %64 : vector<16x32xf32> to vector<2x8x32xf32>
    %c0_34 = arith.constant 0 : index
    %c0_35 = arith.constant 0 : index
    %66 = vector.load %arg13[%c0_34, %c0_35] : memref<8x32xf32, #tpu.memory_space<vmem>>, vector<8x32xf32>
    %67 = vector.shape_cast %66 : vector<8x32xf32> to vector<1x8x32xf32>
    %68 = vector.broadcast %67 : vector<1x8x32xf32> to vector<2x8x32xf32>
    %69 = arith.addf %65, %68 : vector<2x8x32xf32>
    %70 = vector.shape_cast %69 : vector<2x8x32xf32> to vector<16x32xf32>
    %c0_36 = arith.constant 0 : index
    %c0_37 = arith.constant 0 : index
    %71 = vector.load %arg14[%c0_36, %c0_37] : memref<32x96xf32, #tpu.memory_space<vmem>>, vector<32x96xf32>
    %cst_38 = arith.constant dense<0.000000e+00> : vector<16x96xf32>
    %72 = tpu.matmul %70, %71, %cst_38 {dimension_numbers = #tpu.dot_dimension_numbers<[1], [0], [0], [1], [0, 0, 1, 1], [], []>} : vector<16x32xf32>, vector<32x96xf32>, vector<16x96xf32> -> vector<16x96xf32>
    %73 = vector.extract_strided_slice %72 {offsets = [0, 0], sizes = [16, 32], strides = [1, 1]} : vector<16x96xf32> to vector<16x32xf32>
    %74 = vector.shape_cast %73 : vector<16x32xf32> to vector<2x8x32xf32>
    %75 = vector.extract_strided_slice %72 {offsets = [0, 32], sizes = [16, 32], strides = [1, 1]} : vector<16x96xf32> to vector<16x32xf32>
    %76 = vector.shape_cast %75 : vector<16x32xf32> to vector<2x8x32xf32>
    %77 = vector.extract_strided_slice %72 {offsets = [0, 64], sizes = [16, 32], strides = [1, 1]} : vector<16x96xf32> to vector<16x32xf32>
    %78 = vector.shape_cast %77 : vector<16x32xf32> to vector<2x8x32xf32>
    "tpu.trace_start"() <{level = 10 : i32, message = "bqd,bkd->bqk"}> : () -> ()
    %cst_39 = arith.constant dense<0.000000e+00> : vector<2x8x8xf32>
    %79 = tpu.matmul %74, %76, %cst_39 {dimension_numbers = #tpu.dot_dimension_numbers<[2], [2], [1], [1], [0, 0, 0, 1, 1, 1], [0], [0]>} : vector<2x8x32xf32>, vector<2x8x32xf32>, vector<2x8x8xf32> -> vector<2x8x8xf32>
    "tpu.trace_stop"() : () -> ()
    %cst_40 = arith.constant 0.176776692 : f32
    %80 = vector.broadcast %cst_40 : f32 to vector<2x8x8xf32>
    %81 = arith.mulf %79, %80 : vector<2x8x8xf32>
    %82 = tpu.iota {dimensions = array<i32: 0>} : vector<8x8xi32>
    %83 = tpu.iota {dimensions = array<i32: 1>} : vector<8x8xi32>
    %84 = arith.cmpi sle, %83, %82 : vector<8x8xi32>
    %85 = vector.shape_cast %84 : vector<8x8xi1> to vector<1x8x8xi1>
    %cst_41 = arith.constant -1.000000e+30 : f32
    %86 = vector.shape_cast %85 : vector<1x8x8xi1> to vector<1x8x8xi1>
    %87 = vector.broadcast %86 : vector<1x8x8xi1> to vector<2x8x8xi1>
    %88 = vector.broadcast %cst_41 : f32 to vector<2x8x8xf32>
    %89 = arith.select %87, %81, %88 : vector<2x8x8xi1>, vector<2x8x8xf32>
    %cst_42 = arith.constant dense<0xFF800000> : vector<2x8xf32>
    %90 = vector.multi_reduction <maximumf>, %89, %cst_42 [2] : vector<2x8x8xf32> to vector<2x8xf32>
    %91 = vector.shape_cast %90 : vector<2x8xf32> to vector<2x8x1xf32>
    %92 = vector.broadcast %91 : vector<2x8x1xf32> to vector<2x8x8xf32>
    %93 = arith.subf %89, %92 : vector<2x8x8xf32>
    %94 = math.exp %93 : vector<2x8x8xf32>
    %cst_43 = arith.constant dense<0.000000e+00> : vector<2x8xf32>
    %95 = vector.multi_reduction <add>, %94, %cst_43 [2] : vector<2x8x8xf32> to vector<2x8xf32>
    %96 = vector.shape_cast %95 : vector<2x8xf32> to vector<2x8x1xf32>
    %97 = vector.broadcast %96 : vector<2x8x1xf32> to vector<2x8x8xf32>
    %98 = arith.divf %94, %97 : vector<2x8x8xf32>
    "tpu.trace_start"() <{level = 10 : i32, message = "bqk,bkd->bqd"}> : () -> ()
    %cst_44 = arith.constant dense<0.000000e+00> : vector<2x8x32xf32>
    %99 = tpu.matmul %98, %78, %cst_44 {dimension_numbers = #tpu.dot_dimension_numbers<[2], [1], [1], [2], [0, 0, 0, 1, 1, 2], [0], [0]>} : vector<2x8x8xf32>, vector<2x8x32xf32>, vector<2x8x32xf32> -> vector<2x8x32xf32>
    "tpu.trace_stop"() : () -> ()
    %100 = vector.shape_cast %99 : vector<2x8x32xf32> to vector<16x32xf32>
    %c0_45 = arith.constant 0 : index
    %c0_46 = arith.constant 0 : index
    %101 = vector.load %arg15[%c0_45, %c0_46] : memref<32x32xf32, #tpu.memory_space<vmem>>, vector<32x32xf32>
    %cst_47 = arith.constant dense<0.000000e+00> : vector<16x32xf32>
    %102 = tpu.matmul %100, %101, %cst_47 {dimension_numbers = #tpu.dot_dimension_numbers<[1], [0], [0], [1], [0, 0, 1, 1], [], []>} : vector<16x32xf32>, vector<32x32xf32>, vector<16x32xf32> -> vector<16x32xf32>
    %103 = vector.shape_cast %102 : vector<16x32xf32> to vector<2x8x32xf32>
    %104 = arith.addf %69, %103 : vector<2x8x32xf32>
    %105 = vector.shape_cast %104 : vector<2x8x32xf32> to vector<16x32xf32>
    %c0_48 = arith.constant 0 : index
    %c0_49 = arith.constant 0 : index
    %106 = vector.load %arg16[%c0_48, %c0_49] : memref<32x32xf32, #tpu.memory_space<vmem>>, vector<32x32xf32>
    %cst_50 = arith.constant dense<0.000000e+00> : vector<16x32xf32>
    %107 = tpu.matmul %105, %106, %cst_50 {dimension_numbers = #tpu.dot_dimension_numbers<[1], [0], [0], [1], [0, 0, 1, 1], [], []>} : vector<16x32xf32>, vector<32x32xf32>, vector<16x32xf32> -> vector<16x32xf32>
    %108 = vector.shape_cast %107 : vector<16x32xf32> to vector<2x8x32xf32>
    %109 = vector.shape_cast %63 : vector<2x4x32xf32> to vector<8x32xf32>
    %c0_51 = arith.constant 0 : index
    %c0_52 = arith.constant 0 : index
    %110 = vector.load %arg17[%c0_51, %c0_52] : memref<32x64xf32, #tpu.memory_space<vmem>>, vector<32x64xf32>
    %cst_53 = arith.constant dense<0.000000e+00> : vector<8x64xf32>
    %111 = tpu.matmul %109, %110, %cst_53 {dimension_numbers = #tpu.dot_dimension_numbers<[1], [0], [0], [1], [0, 0, 1, 1], [], []>} : vector<8x32xf32>, vector<32x64xf32>, vector<8x64xf32> -> vector<8x64xf32>
    %112 = vector.extract_strided_slice %111 {offsets = [0, 0], sizes = [8, 32], strides = [1, 1]} : vector<8x64xf32> to vector<8x32xf32>
    %113 = vector.shape_cast %112 : vector<8x32xf32> to vector<2x4x32xf32>
    %114 = vector.extract_strided_slice %111 {offsets = [0, 32], sizes = [8, 32], strides = [1, 1]} : vector<8x64xf32> to vector<8x32xf32>
    %115 = vector.shape_cast %114 : vector<8x32xf32> to vector<2x4x32xf32>
    "tpu.trace_start"() <{level = 10 : i32, message = "bqd,bkd->bqk"}> : () -> ()
    %cst_54 = arith.constant dense<0.000000e+00> : vector<2x8x4xf32>
    %116 = tpu.matmul %108, %113, %cst_54 {dimension_numbers = #tpu.dot_dimension_numbers<[2], [2], [1], [1], [0, 0, 0, 1, 1, 1], [0], [0]>} : vector<2x8x32xf32>, vector<2x4x32xf32>, vector<2x8x4xf32> -> vector<2x8x4xf32>
    "tpu.trace_stop"() : () -> ()
    %cst_55 = arith.constant 0.176776692 : f32
    %117 = vector.broadcast %cst_55 : f32 to vector<2x8x4xf32>
    %118 = arith.mulf %116, %117 : vector<2x8x4xf32>
    %cst_56 = arith.constant dense<0xFF800000> : vector<2x8xf32>
    %119 = vector.multi_reduction <maximumf>, %118, %cst_56 [2] : vector<2x8x4xf32> to vector<2x8xf32>
    %120 = vector.shape_cast %119 : vector<2x8xf32> to vector<2x8x1xf32>
    %121 = vector.broadcast %120 : vector<2x8x1xf32> to vector<2x8x4xf32>
    %122 = arith.subf %118, %121 : vector<2x8x4xf32>
    %123 = math.exp %122 : vector<2x8x4xf32>
    %cst_57 = arith.constant dense<0.000000e+00> : vector<2x8xf32>
    %124 = vector.multi_reduction <add>, %123, %cst_57 [2] : vector<2x8x4xf32> to vector<2x8xf32>
    %125 = vector.shape_cast %124 : vector<2x8xf32> to vector<2x8x1xf32>
    %126 = vector.broadcast %125 : vector<2x8x1xf32> to vector<2x8x4xf32>
    %127 = arith.divf %123, %126 : vector<2x8x4xf32>
    "tpu.trace_start"() <{level = 10 : i32, message = "bqk,bkd->bqd"}> : () -> ()
    %cst_58 = arith.constant dense<0.000000e+00> : vector<2x8x32xf32>
    %128 = tpu.matmul %127, %115, %cst_58 {dimension_numbers = #tpu.dot_dimension_numbers<[2], [1], [1], [2], [0, 0, 0, 1, 1, 2], [0], [0]>} : vector<2x8x4xf32>, vector<2x4x32xf32>, vector<2x8x32xf32> -> vector<2x8x32xf32>
    "tpu.trace_stop"() : () -> ()
    %129 = vector.shape_cast %128 : vector<2x8x32xf32> to vector<16x32xf32>
    %c0_59 = arith.constant 0 : index
    %c0_60 = arith.constant 0 : index
    %130 = vector.load %arg18[%c0_59, %c0_60] : memref<32x32xf32, #tpu.memory_space<vmem>>, vector<32x32xf32>
    %cst_61 = arith.constant dense<0.000000e+00> : vector<16x32xf32>
    %131 = tpu.matmul %129, %130, %cst_61 {dimension_numbers = #tpu.dot_dimension_numbers<[1], [0], [0], [1], [0, 0, 1, 1], [], []>} : vector<16x32xf32>, vector<32x32xf32>, vector<16x32xf32> -> vector<16x32xf32>
    %132 = vector.shape_cast %131 : vector<16x32xf32> to vector<2x8x32xf32>
    %133 = arith.addf %104, %132 : vector<2x8x32xf32>
    %134 = vector.shape_cast %133 : vector<2x8x32xf32> to vector<16x32xf32>
    %c0_62 = arith.constant 0 : index
    %c0_63 = arith.constant 0 : index
    %135 = vector.load %arg19[%c0_62, %c0_63] : memref<32x128xf32, #tpu.memory_space<vmem>>, vector<32x128xf32>
    %cst_64 = arith.constant dense<0.000000e+00> : vector<16x128xf32>
    %136 = tpu.matmul %134, %135, %cst_64 {dimension_numbers = #tpu.dot_dimension_numbers<[1], [0], [0], [1], [0, 0, 1, 1], [], []>} : vector<16x32xf32>, vector<32x128xf32>, vector<16x128xf32> -> vector<16x128xf32>
    %c0_65 = arith.constant 0 : index
    %c0_66 = arith.constant 0 : index
    %137 = vector.load %arg20[%c0_65, %c0_66] : memref<1x128xf32, #tpu.memory_space<vmem>>, vector<1x128xf32>
    %138 = vector.broadcast %137 : vector<1x128xf32> to vector<16x128xf32>
    %139 = arith.addf %136, %138 : vector<16x128xf32>
    %140 = arith.mulf %139, %139 : vector<16x128xf32>
    %141 = arith.mulf %139, %140 : vector<16x128xf32>
    %cst_67 = arith.constant 4.471500e-02 : f32
    %142 = vector.broadcast %cst_67 : f32 to vector<16x128xf32>
    %143 = arith.mulf %142, %141 : vector<16x128xf32>
    %144 = arith.addf %139, %143 : vector<16x128xf32>
    %cst_68 = arith.constant 0.797884583 : f32
    %145 = vector.broadcast %cst_68 : f32 to vector<16x128xf32>
    %146 = arith.mulf %145, %144 : vector<16x128xf32>
    %147 = math.tanh %146 : vector<16x128xf32>
    %cst_69 = arith.constant 1.000000e+00 : f32
    %148 = vector.broadcast %cst_69 : f32 to vector<16x128xf32>
    %149 = arith.addf %148, %147 : vector<16x128xf32>
    %cst_70 = arith.constant 5.000000e-01 : f32
    %150 = vector.broadcast %cst_70 : f32 to vector<16x128xf32>
    %151 = arith.mulf %150, %149 : vector<16x128xf32>
    %152 = arith.mulf %139, %151 : vector<16x128xf32>
    %c0_71 = arith.constant 0 : index
    %c0_72 = arith.constant 0 : index
    %153 = vector.load %arg21[%c0_71, %c0_72] : memref<128x32xf32, #tpu.memory_space<vmem>>, vector<128x32xf32>
    %cst_73 = arith.constant dense<0.000000e+00> : vector<16x32xf32>
    %154 = tpu.matmul %152, %153, %cst_73 {dimension_numbers = #tpu.dot_dimension_numbers<[1], [0], [0], [1], [0, 0, 1, 1], [], []>} : vector<16x128xf32>, vector<128x32xf32>, vector<16x32xf32> -> vector<16x32xf32>
    %155 = arith.addf %134, %154 : vector<16x32xf32>
    %c0_74 = arith.constant 0 : index
    %c0_75 = arith.constant 0 : index
    %156 = vector.load %arg22[%c0_74, %c0_75] : memref<1x32xf32, #tpu.memory_space<vmem>>, vector<1x32xf32>
    %157 = vector.broadcast %156 : vector<1x32xf32> to vector<16x32xf32>
    %158 = arith.addf %155, %157 : vector<16x32xf32>
    %c0_76 = arith.constant 0 : index
    %c0_77 = arith.constant 0 : index
    %159 = vector.load %arg23[%c0_76, %c0_77] : memref<32x128xf32, #tpu.memory_space<vmem>>, vector<32x128xf32>
    %cst_78 = arith.constant dense<0.000000e+00> : vector<16x128xf32>
    %160 = tpu.matmul %158, %159, %cst_78 {dimension_numbers = #tpu.dot_dimension_numbers<[1], [0], [0], [1], [0, 0, 1, 1], [], []>} : vector<16x32xf32>, vector<32x128xf32>, vector<16x128xf32> -> vector<16x128xf32>
    %c0_79 = arith.constant 0 : index
    %c0_80 = arith.constant 0 : index
    %161 = vector.load %arg24[%c0_79, %c0_80] : memref<1x128xf32, #tpu.memory_space<vmem>>, vector<1x128xf32>
    %162 = vector.broadcast %161 : vector<1x128xf32> to vector<16x128xf32>
    %163 = arith.addf %160, %162 : vector<16x128xf32>
    %cst_81 = arith.constant dense<0xFF800000> : vector<16xf32>
    %164 = vector.multi_reduction <maximumf>, %163, %cst_81 [1] : vector<16x128xf32> to vector<16xf32>
    %165 = vector.shape_cast %164 : vector<16xf32> to vector<16x1xf32>
    %166 = vector.broadcast %165 : vector<16x1xf32> to vector<16x128xf32>
    %167 = arith.subf %163, %166 : vector<16x128xf32>
    %168 = math.exp %167 : vector<16x128xf32>
    %cst_82 = arith.constant dense<0.000000e+00> : vector<16xf32>
    %169 = vector.multi_reduction <add>, %168, %cst_82 [1] : vector<16x128xf32> to vector<16xf32>
    %170 = vector.shape_cast %169 : vector<16xf32> to vector<16x1xf32>
    %171 = math.log %170 : vector<16x1xf32>
    %172 = arith.addf %165, %171 : vector<16x1xf32>
    %173 = vector.broadcast %172 : vector<16x1xf32> to vector<16x128xf32>
    %174 = arith.subf %163, %173 : vector<16x128xf32>
    %c0_83 = arith.constant 0 : index
    %c0_84 = arith.constant 0 : index
    %175 = vector.load %arg2[%c0_83, %c0_84] : memref<16x1xi32, #tpu.memory_space<vmem>>, vector<16x1xi32>
    %176 = tpu.iota {dimensions = array<i32: 1>} : vector<16x128xi32>
    %177 = vector.broadcast %175 : vector<16x1xi32> to vector<16x128xi32>
    %178 = arith.cmpi eq, %176, %177 : vector<16x128xi32>
    %179 = arith.extui %178 : vector<16x128xi1> to vector<16x128xi32>
    %180 = arith.sitofp %179 : vector<16x128xi32> to vector<16x128xf32>
    %cst_85 = arith.constant 0.000000e+00 : f32
    %181 = vector.broadcast %cst_85 : f32 to vector<16x128xf32>
    %182 = arith.subf %181, %174 : vector<16x128xf32>
    %183 = arith.mulf %180, %182 : vector<16x128xf32>
    %cst_86 = arith.constant dense<0.000000e+00> : vector<16xf32>
    %184 = vector.multi_reduction <add>, %183, %cst_86 [1] : vector<16x128xf32> to vector<16xf32>
    %185 = vector.shape_cast %184 : vector<16xf32> to vector<16x1xf32>
    %c0_i32 = arith.constant 0 : i32
    %186 = vector.broadcast %c0_i32 : i32 to vector<16x1xi32>
    %187 = arith.cmpi sge, %175, %186 : vector<16x1xi32>
    %188 = arith.extui %187 : vector<16x1xi1> to vector<16x1xi32>
    %189 = arith.sitofp %188 : vector<16x1xi32> to vector<16x1xf32>
    %190 = arith.mulf %185, %189 : vector<16x1xf32>
    %cst_87 = arith.constant dense<0.000000e+00> : vector<1xf32>
    %191 = vector.multi_reduction <add>, %190, %cst_87 [0] : vector<16x1xf32> to vector<1xf32>
    %192 = vector.shape_cast %191 : vector<1xf32> to vector<1x1xf32>
    %cst_88 = arith.constant dense<0.000000e+00> : vector<1xf32>
    %193 = vector.multi_reduction <add>, %189, %cst_88 [0] : vector<16x1xf32> to vector<1xf32>
    %194 = vector.shape_cast %193 : vector<1xf32> to vector<1x1xf32>
    %cst_89 = arith.constant 1.000000e+00 : f32
    %195 = vector.broadcast %cst_89 : f32 to vector<1x1xf32>
    %196 = arith.maximumf %194, %195 : vector<1x1xf32>
    %197 = arith.divf %192, %196 : vector<1x1xf32>
    %c0_90 = arith.constant 0 : index
    %c0_91 = arith.constant 0 : index
    %198 = vector.load %arg25[%c0_90, %c0_91] : memref<1x1xf32, #tpu.memory_space<vmem>>, vector<1x1xf32>
    tpu.vector_store %arg25[%c0_90, %c0_91], %197 {strides = array<i32>} : memref<1x1xf32, #tpu.memory_space<vmem>>, vector<1x1xf32>,
    %c0_92 = arith.constant 0 : index
    %c0_93 = arith.constant 0 : index
    %199 = vector.load %arg3[%c0_92, %c0_93] : memref<16x128xf32, #tpu.memory_space<vmem>>, vector<16x128xf32>
    %cst_94 = arith.constant 1.000000e-01 : f32
    %200 = vector.broadcast %cst_94 : f32 to vector<16x128xf32>
    %201 = arith.cmpf oge, %199, %200 : vector<16x128xf32>
    %202 = arith.extui %201 : vector<16x128xi1> to vector<16x128xi32>
    %203 = arith.sitofp %202 : vector<16x128xi32> to vector<16x128xf32>
    %204 = arith.mulf %163, %203 : vector<16x128xf32>
    %cst_95 = arith.constant 1.11111116 : f32
    %205 = vector.broadcast %cst_95 : f32 to vector<16x128xf32>
    %206 = arith.mulf %204, %205 : vector<16x128xf32>
    %c0_96 = arith.constant 0 : index
    %c0_97 = arith.constant 0 : index
    %207 = vector.load %arg26[%c0_96, %c0_97] : memref<16x128xf32, #tpu.memory_space<vmem>>, vector<16x128xf32>
    tpu.vector_store %arg26[%c0_96, %c0_97], %206 {strides = array<i32>} : memref<16x128xf32, #tpu.memory_space<vmem>>, vector<16x128xf32>,
    return
  }
}

</mosaic_0001>

<llo_original>
// kernel: trocr_forward.1
$region0: #{trocr_forward.1}
  #allocation0 [shape = 'u32[]', space=smem, size = 0x4, offset = 0x4, fixed_abs, tag = 'smem constant byte address 0x4 - core index']
  #allocation1 [shape = 'u32[72,128]{1,0:T(1,128)}', space=vmem, size = 0x9000, scoped, tag = 'internal scratch']
  %s0 = inlined_call_operand.vmem [shape: f32[8,192], index: 0, kind: input, shape index: {}]
  %s1 = inlined_call_operand.vmem [shape: f32[16,32], index: 1, kind: input, shape index: {}]
  %s2 = inlined_call_operand.vmem [shape: s32[16,1], index: 2, kind: input, shape index: {}]
  %s3 = inlined_call_operand.vmem [shape: f32[16,128], index: 3, kind: input, shape index: {}]
  %s4 = inlined_call_operand.vmem [shape: f32[192,32], index: 4, kind: input, shape index: {}]
  %s5 = inlined_call_operand.vmem [shape: f32[1,32], index: 5, kind: input, shape index: {}]
  %s6 = inlined_call_operand.vmem [shape: f32[4,32], index: 6, kind: input, shape index: {}]
  %s7 = inlined_call_operand.vmem [shape: f32[32,96], index: 7, kind: input, shape index: {}]
  %s8 = inlined_call_operand.vmem [shape: f32[32,32], index: 8, kind: input, shape index: {}]
  %s9 = inlined_call_operand.vmem [shape: f32[32,128], index: 9, kind: input, shape index: {}]
  %s10 = inlined_call_operand.vmem [shape: f32[1,128], index: 10, kind: input, shape index: {}]
  %s11 = inlined_call_operand.vmem [shape: f32[128,32], index: 11, kind: input, shape index: {}]
  %s12 = inlined_call_operand.vmem [shape: f32[1,32], index: 12, kind: input, shape index: {}]
  %s13 = inlined_call_operand.vmem [shape: f32[8,32], index: 13, kind: input, shape index: {}]
  %s14 = inlined_call_operand.vmem [shape: f32[32,96], index: 14, kind: input, shape index: {}]
  %s15 = inlined_call_operand.vmem [shape: f32[32,32], index: 15, kind: input, shape index: {}]
  %s16 = inlined_call_operand.vmem [shape: f32[32,32], index: 16, kind: input, shape index: {}]
  %s17 = inlined_call_operand.vmem [shape: f32[32,64], index: 17, kind: input, shape index: {}]
  %s18 = inlined_call_operand.vmem [shape: f32[32,32], index: 18, kind: input, shape index: {}]
  %s19 = inlined_call_operand.vmem [shape: f32[32,128], index: 19, kind: input, shape index: {}]
  %s20 = inlined_call_operand.vmem [shape: f32[1,128], index: 20, kind: input, shape index: {}]
  %s21 = inlined_call_operand.vmem [shape: f32[128,32], index: 21, kind: input, shape index: {}]
  %s22 = inlined_call_operand.vmem [shape: f32[1,32], index: 22, kind: input, shape index: {}]
  %s23 = inlined_call_operand.vmem [shape: f32[32,128], index: 23, kind: input, shape index: {}]
  %s24 = inlined_call_operand.vmem [shape: f32[1,128], index: 24, kind: input, shape index: {}]
  %s25 = inlined_call_operand.hbm [shape: f32[1,1], index: 25, kind: output, shape index: {0}]
  %s26 = inlined_call_operand.vmem [shape: f32[16,128], index: 26, kind: output, shape index: {1}]
  %27 = xla_tuple %s25, %s26
  %s28 = sld [smem:[#allocation0]]
  $region118: #{trocr_forward.1} parent=0
    _
  %s30 = ssub.s32 1, %s28
  %s31 = scalar_select 0, %s30, %s28
  $region1: #{trocr_forward.1} parent=0
    #allocation2 [shape = 'u8[512]{0}', space=vmem, size = 0x400, scoped, tag = 'output window, operand 0, single buffered']
    #allocation3 [shape = 's32[1]{0}', space=sflag, size = 0x4, scoped, tag = 'scoped memory for trocr_forward.1']
    %32 = vsyncpa [#allocation3], 0
    // Predicated region
    $region2: #{trocr_forward.1} parent=1 // pred_check
      _
    $region3: #{trocr_forward.1} parent=1 // pred_check_branch
      %34 = sbr.rel (0) target = $region5
    $region4: #{trocr_forward.1} parent=1 // pred_region
      _
    $region5: #{trocr_forward.1} parent=1 // pred_fallthru
      _
    // Predicated region
    $region6: #{trocr_forward.1} parent=1 // pred_check
      _
    $region7: #{trocr_forward.1} parent=1 // pred_check_branch
      %36 = sbr.rel (0) target = $region9
    $region8: #{trocr_forward.1} parent=1 // pred_region
      _
    $region9: #{trocr_forward.1} parent=1 // pred_fallthru
      _
    // Predicated region
    $region10: #{trocr_forward.1} parent=1 // pred_check
      _
    $region11: #{trocr_forward.1} parent=1 // pred_check_branch
      %38 = sbr.rel (0) target = $region13
    $region12: #{trocr_forward.1} parent=1 // pred_region
      _
    $region13: #{trocr_forward.1} parent=1 // pred_fallthru
      _
    // Predicated region
    $region14: #{trocr_forward.1} parent=1 // pred_check
      _
    $region15: #{trocr_forward.1} parent=1 // pred_check_branch
      %40 = sbr.rel (0) target = $region17
    $region16: #{trocr_forward.1} parent=1 // pred_region
      _
    $region17: #{trocr_forward.1} parent=1 // pred_fallthru
      _
    // Predicated region
    $region18: #{trocr_forward.1} parent=1 // pred_check
      _
    $region19: #{trocr_forward.1} parent=1 // pred_check_branch
      %42 = sbr.rel (0) target = $region21
    $region20: #{trocr_forward.1} parent=1 // pred_region
      _
    $region21: #{trocr_forward.1} parent=1 // pred_fallthru
      _
    // Predicated region
    $region22: #{trocr_forward.1} parent=1 // pred_check
      _
    $region23: #{trocr_forward.1} parent=1 // pred_check_branch
      %44 = sbr.rel (0) target = $region25
    $region24: #{trocr_forward.1} parent=1 // pred_region
      _
    $region25: #{trocr_forward.1} parent=1 // pred_fallthru
      _
    // Predicated region
    $region26: #{trocr_forward.1} parent=1 // pred_check
      _
    $region27: #{trocr_forward.1} parent=1 // pred_check_branch
      %46 = sbr.rel (0) target = $region29
    $region28: #{trocr_forward.1} parent=1 // pred_region
      _
    $region29: #{trocr_forward.1} parent=1 // pred_fallthru
      _
    // Predicated region
    $region30: #{trocr_forward.1} parent=1 // pred_check
      _
    $region31: #{trocr_forward.1} parent=1 // pred_check_branch
      %48 = sbr.rel (0) target = $region33
    $region32: #{trocr_forward.1} parent=1 // pred_region
      _
    $region33: #{trocr_forward.1} parent=1 // pred_fallthru
      _
    // Predicated region
    $region34: #{trocr_forward.1} parent=1 // pred_check
      _
    $region35: #{trocr_forward.1} parent=1 // pred_check_branch
      %50 = sbr.rel (0) target = $region37
    $region36: #{trocr_forward.1} parent=1 // pred_region
      _
    $region37: #{trocr_forward.1} parent=1 // pred_fallthru
      _
    // Predicated region
    $region38: #{trocr_forward.1} parent=1 // pred_check
      _
    $region39: #{trocr_forward.1} parent=1 // pred_check_branch
      %52 = sbr.rel (0) target = $region41
    $region40: #{trocr_forward.1} parent=1 // pred_region
      _
    $region41: #{trocr_forward.1} parent=1 // pred_fallthru
      _
    // Predicated region
    $region42: #{trocr_forward.1} parent=1 // pred_check
      _
    $region43: #{trocr_forward.1} parent=1 // pred_check_branch
      %54 = sbr.rel (0) target = $region45
    $region44: #{trocr_forward.1} parent=1 // pred_region
      _
    $region45: #{trocr_forward.1} parent=1 // pred_fallthru
      _
    // Predicated region
    $region46: #{trocr_forward.1} parent=1 // pred_check
      _
    $region47: #{trocr_forward.1} parent=1 // pred_check_branch
      %56 = sbr.rel (0) target = $region49
    $region48: #{trocr_forward.1} parent=1 // pred_region
      _
    $region49: #{trocr_forward.1} parent=1 // pred_fallthru
      _
    // Predicated region
    $region50: #{trocr_forward.1} parent=1 // pred_check
      _
    $region51: #{trocr_forward.1} parent=1 // pred_check_branch
      %58 = sbr.rel (0) target = $region53
    $region52: #{trocr_forward.1} parent=1 // pred_region
      _
    $region53: #{trocr_forward.1} parent=1 // pred_fallthru
      _
    // Predicated region
    $region54: #{trocr_forward.1} parent=1 // pred_check
      _
    $region55: #{trocr_forward.1} parent=1 // pred_check_branch
      %60 = sbr.rel (0) target = $region57
    $region56: #{trocr_forward.1} parent=1 // pred_region
      _
    $region57: #{trocr_forward.1} parent=1 // pred_fallthru
      _
    // Predicated region
    $region58: #{trocr_forward.1} parent=1 // pred_check
      _
    $region59: #{trocr_forward.1} parent=1 // pred_check_branch
      %62 = sbr.rel (0) target = $region61
    $region60: #{trocr_forward.1} parent=1 // pred_region
      _
    $region61: #{trocr_forward.1} parent=1 // pred_fallthru
      _
    // Predicated region
    $region62: #{trocr_forward.1} parent=1 // pred_check
      _
    $region63: #{trocr_forward.1} parent=1 // pred_check_branch
      %64 = sbr.rel (0) target = $region65
    $region64: #{trocr_forward.1} parent=1 // pred_region
      _
    $region65: #{trocr_forward.1} parent=1 // pred_fallthru
      _
    // Predicated region
    $region66: #{trocr_forward.1} parent=1 // pred_check
      _
    $region67: #{trocr_forward.1} parent=1 // pred_check_branch
      %66 = sbr.rel (0) target = $region69
    $region68: #{trocr_forward.1} parent=1 // pred_region
      _
    $region69: #{trocr_forward.1} parent=1 // pred_fallthru
      _
    // Predicated region
    $region70: #{trocr_forward.1} parent=1 // pred_check
      _
    $region71: #{trocr_forward.1} parent=1 // pred_check_branch
      %68 = sbr.rel (0) target = $region73
    $region72: #{trocr_forward.1} parent=1 // pred_region
      _
    $region73: #{trocr_forward.1} parent=1 // pred_fallthru
      _
    // Predicated region
    $region74: #{trocr_forward.1} parent=1 // pred_check
      _
    $region75: #{trocr_forward.1} parent=1 // pred_check_branch
      %70 = sbr.rel (0) target = $region77
    $region76: #{trocr_forward.1} parent=1 // pred_region
      _
    $region77: #{trocr_forward.1} parent=1 // pred_fallthru
      _
    // Predicated region
    $region78: #{trocr_forward.1} parent=1 // pred_check
      _
    $region79: #{trocr_forward.1} parent=1 // pred_check_branch
      %72 = sbr.rel (0) target = $region81
    $region80: #{trocr_forward.1} parent=1 // pred_region
      _
    $region81: #{trocr_forward.1} parent=1 // pred_fallthru
      _
    // Predicated region
    $region82: #{trocr_forward.1} parent=1 // pred_check
      _
    $region83: #{trocr_forward.1} parent=1 // pred_check_branch
      %74 = sbr.rel (0) target = $region85
    $region84: #{trocr_forward.1} parent=1 // pred_region
      _
    $region85: #{trocr_forward.1} parent=1 // pred_fallthru
      _
    // Predicated region
    $region86: #{trocr_forward.1} parent=1 // pred_check
      _
    $region87: #{trocr_forward.1} parent=1 // pred_check_branch
      %76 = sbr.rel (0) target = $region89
    $region88: #{trocr_forward.1} parent=1 // pred_region
      _
    $region89: #{trocr_forward.1} parent=1 // pred_fallthru
      _
    // Predicated region
    $region90: #{trocr_forward.1} parent=1 // pred_check
      _
    $region91: #{trocr_forward.1} parent=1 // pred_check_branch
      %78 = sbr.rel (0) target = $region93
    $region92: #{trocr_forward.1} parent=1 // pred_region
      _
    $region93: #{trocr_forward.1} parent=1 // pred_fallthru
      _
    // Predicated region
    $region94: #{trocr_forward.1} parent=1 // pred_check
      _
    $region95: #{trocr_forward.1} parent=1 // pred_check_branch
      %80 = sbr.rel (0) target = $region97
    $region96: #{trocr_forward.1} parent=1 // pred_region
      _
    $region97: #{trocr_forward.1} parent=1 // pred_fallthru
      _
    // Predicated region
    $region98: #{trocr_forward.1} parent=1 // pred_check
      _
    $region99: #{trocr_forward.1} parent=1 // pred_check_branch
      %82 = sbr.rel (0) target = $region101
    $region100: #{trocr_forward.1} parent=1 // pred_region
      _
    $region101: #{trocr_forward.1} parent=1 // pred_fallthru
      _
    %v83 = vld [vmem:[%s0] sm:$0xff]
    %v84 = vld [vmem:[%s0 + $0x8] sm:$0xff]
    %v85 = vld [vmem:[%s4] sm:$0xff]
    %v86 = vld [vmem:[%s4 + $0x8] sm:$0xff]
    %v87 = vld [vmem:[%s4 + $0x10] sm:$0xff]
    %v88 = vld [vmem:[%s4 + $0x18] sm:$0xff]
    %v89 = vld [vmem:[%s4 + $0x20] sm:$0xff]
    %v90 = vld [vmem:[%s4 + $0x28] sm:$0xff]
    %v91 = vld [vmem:[%s4 + $0x30] sm:$0xff]
    %v92 = vld [vmem:[%s4 + $0x38] sm:$0xff]
    %v93 = vld [vmem:[%s4 + $0x40] sm:$0xff]
    %v94 = vld [vmem:[%s4 + $0x48] sm:$0xff]
    %v95 = vld [vmem:[%s4 + $0x50] sm:$0xff]
    %v96 = vld [vmem:[%s4 + $0x58] sm:$0xff]
    %v97 = vld [vmem:[%s4 + $0x60] sm:$0xff]
    %v98 = vld [vmem:[%s4 + $0x68] sm:$0xff]
    %v99 = vld [vmem:[%s4 + $0x70] sm:$0xff]
    %v100 = vld [vmem:[%s4 + $0x78] sm:$0xff]
    %v101 = vld [vmem:[%s4 + $0x80] sm:$0xff]
    %v102 = vld [vmem:[%s4 + $0x88] sm:$0xff]
    %v103 = vld [vmem:[%s4 + $0x90] sm:$0xff]
    %v104 = vld [vmem:[%s4 + $0x98] sm:$0xff]
    %v105 = vld [vmem:[%s4 + $0xa0] sm:$0xff]
    %v106 = vld [vmem:[%s4 + $0xa8] sm:$0xff]
    %v107 = vld [vmem:[%s4 + $0xb0] sm:$0xff]
    %v108 = vld [vmem:[%s4 + $0xb8] sm:$0xff]
    %v109 = vld [vmem:[%s5] sm:$0x1]
    %v111 = vperm.slane %v109, 0
    %vm113 = vcmask 523264
    %v115 = vsel %vm113, %v84, 0
    %117 = vmatpush.msra.mxu0 %v100
    %118 = vmatpush.msra.mxu0 %v99
    %119 = vmatpush.msra.mxu0 %v98
    %120 = vmatpush.msra.mxu0 %v97
    %121 = vmatpush.msra.mxu0 %v96
    %122 = vmatpush.msra.mxu0 %v95
    %123 = vmatpush.msra.mxu0 %v94
    %124 = vmatpush.msra.mxu0 %v93
    %125 = vmatpush.msra.mxu0 %v92
    %126 = vmatpush.msra.mxu0 %v91
    %127 = vmatpush.msra.mxu0 %v90
    %128 = vmatpush.msra.mxu0 %v89
    %129 = vmatpush.msra.mxu0 %v88
    %130 = vmatpush.msra.mxu0 %v87
    %131 = vmatpush.msra.mxu0 %v86
    %132 = vmatpush.msra.mxu0 %v85
    %133 = vmatmul.f32.gmra.mxu0 %v83
    %v134 = vpop.f32.mrf.mxu0
    %v135 = vadd.f32 %v111, %v134
    %136 = vdwg.mxu0
    %137 = vmatpush.msra.mxu0 0.0
    %138 = vmatpush.msra.mxu0 0.0
    %139 = vmatpush.msra.mxu0 0.0
    %140 = vmatpush.msra.mxu0 0.0
    %141 = vmatpush.msra.mxu0 0.0
    %142 = vmatpush.msra.mxu0 0.0
    %143 = vmatpush.msra.mxu0 0.0
    %144 = vmatpush.msra.mxu0 0.0
    %145 = vmatpush.msra.mxu0 %v108
    %146 = vmatpush.msra.mxu0 %v107
    %147 = vmatpush.msra.mxu0 %v106
    %148 = vmatpush.msra.mxu0 %v105
    %149 = vmatpush.msra.mxu0 %v104
    %150 = vmatpush.msra.mxu0 %v103
    %151 = vmatpush.msra.mxu0 %v102
    %152 = vmatpush.msra.mxu0 %v101
    %153 = vmatmul.f32.gmra.mxu0 %v115
    %v154 = vpop.f32.mrf.mxu0
    %v155 = vadd.f32 %v135, %v154
    %156 = vdwg.mxu0
    %v158 = vrot.slane %v155, 4
    %v160 = vld [vmem:[%s6] sm:$0xf]
    %v161 = vadd.f32 %v155, %v160
    %v162 = vadd.f32 %v158, %v160
    %v163 = vld [vmem:[%s7] sm:$0xff]
    %v164 = vld [vmem:[%s7 + $0x8] sm:$0xff]
    %v165 = vld [vmem:[%s7 + $0x10] sm:$0xff]
    %v166 = vld [vmem:[%s7 + $0x18] sm:$0xff]
    %169 = vst [vmem:[#allocation1] ss:$2 sm:$0xff] %v161
    %s170 = scalar_lea.vmem [#allocation1], 1
    %171 = vst [vmem:[%s170] ss:$2 sm:$0xff] %v162
    %v172 = vld.sshfl [vmem:[#allocation1] sm:$0xff pattern:$0x75316420]
    %vm173 = vcmask 261120
    %v174 = vsel %vm173, %v172, 0
    %176 = vmatpush.msra.mxu0 0.0
    %177 = vmatpush.msra.mxu0 0.0
    %178 = vmatpush.msra.mxu0 0.0
    %179 = vmatpush.msra.mxu0 0.0
    %180 = vmatpush.msra.mxu0 0.0
    %181 = vmatpush.msra.mxu0 0.0
    %182 = vmatpush.msra.mxu0 0.0
    %183 = vmatpush.msra.mxu0 0.0
    %184 = vmatpush.msra.mxu0 0.0
    %185 = vmatpush.msra.mxu0 0.0
    %186 = vmatpush.msra.mxu0 0.0
    %187 = vmatpush.msra.mxu0 0.0
    %188 = vmatpush.msra.mxu0 %v166
    %189 = vmatpush.msra.mxu0 %v165
    %190 = vmatpush.msra.mxu0 %v164
    %191 = vmatpush.msra.mxu0 %v163
    %192 = vmatmul.f32.gmra.mxu0 %v174
    %v193 = vpop.f32.mrf.mxu0
    %v194 = vadd.f32 0.0, %v193
    %195 = vdwg.mxu0
    %v197 = vrot.slane %v194, 4
    %198 = vst [vmem:[#allocation1] ss:$2 sm:$0xff] %v194
    %v199 = vld.sshfl [vmem:[#allocation1] sm:$0xff pattern:$0x75316420]
    %200 = vrot.lane.b32.xlu0 %v199, 96
    %v201 = vpop.permute.xlu0 %200
    %v202 = vsel %vm173, %v194, 0
    %v204 = vsel %vm173, %v201, 0
    %206 = vmatpush.xpose.msra.mxu0 0.0
    %207 = vmatpush.xpose.msra.mxu0 0.0
    %208 = vmatpush.xpose.msra.mxu0 0.0
    %209 = vmatpush.xpose.msra.mxu0 0.0
    %210 = vmatpush.xpose.msra.mxu0 0.0
    %211 = vmatpush.xpose.msra.mxu0 0.0
    %212 = vmatpush.xpose.msra.mxu0 0.0
    %213 = vmatpush.xpose.msra.mxu0 0.0
    %214 = vmatpush.xpose.msra.mxu0 0.0
    %215 = vmatpush.xpose.msra.mxu0 0.0
    %216 = vmatpush.xpose.msra.mxu0 0.0
    %217 = vmatpush.xpose.msra.mxu0 0.0
    %218 = vmatpush.xpose.msra.mxu0 0.0
    %219 = vmatpush.xpose.msra.mxu0 0.0
    %220 = vmatpush.xpose.msra.mxu0 0.0
    %221 = vmatpush.xpose.msra.mxu0 %v204
    %222 = vmatmul.f32.gmra.mxu0 %v202
    %v223 = vpop.f32.mrf.mxu0
    %v224 = vadd.f32 0.0, %v223
    %225 = vdwg.mxu0
    %226 = vst [vmem:[#allocation1] ss:$2 sm:$0xff] %v197
    %v227 = vld.sshfl [vmem:[#allocation1] sm:$0xff pattern:$0x75316420]
    %228 = vrot.lane.b32.xlu0 %v227, 96
    %v229 = vpop.permute.xlu0 %228
    %v230 = vsel %vm173, %v197, 0
    %v232 = vsel %vm173, %v229, 0
    %234 = vmatpush.xpose.msra.mxu0 0.0
    %235 = vmatpush.xpose.msra.mxu0 0.0
    %236 = vmatpush.xpose.msra.mxu0 0.0
    %237 = vmatpush.xpose.msra.mxu0 0.0
    %238 = vmatpush.xpose.msra.mxu0 0.0
    %239 = vmatpush.xpose.msra.mxu0 0.0
    %240 = vmatpush.xpose.msra.mxu0 0.0
    %241 = vmatpush.xpose.msra.mxu0 0.0
    %242 = vmatpush.xpose.msra.mxu0 0.0
    %243 = vmatpush.xpose.msra.mxu0 0.0
    %244 = vmatpush.xpose.msra.mxu0 0.0
    %245 = vmatpush.xpose.msra.mxu0 0.0
    %246 = vmatpush.xpose.msra.mxu0 0.0
    %247 = vmatpush.xpose.msra.mxu0 0.0
    %248 = vmatpush.xpose.msra.mxu0 0.0
    %249 = vmatpush.xpose.msra.mxu0 %v232
    %250 = vmatmul.f32.gmra.mxu0 %v230
    %v251 = vpop.f32.mrf.mxu0
    %v252 = vadd.f32 0.0, %v251
    %253 = vdwg.mxu0
    %v254 = vmul.f32 %v224, 0.17677669
    %v255 = vmul.f32 %v252, 0.17677669
    %vm256 = vcmask 27648
    %v257 = vsel %vm256, %v254, -inf
    %258 = vmax.xlane.f32.xlu0 %v257
    %v259 = vpop.xlane.xlu0 %258
    %v260 = vsel %vm256, %v255, -inf
    %261 = vmax.xlane.f32.xlu0 %v260
    %v262 = vpop.xlane.xlu0 %261
    %v263 = vsub.f32 %v254, %v259
    %v264 = vsub.f32 %v255, %v262
    %v265 = vmul.f32 %v263, 1.442695
    %v266 = vpow.pop %v265
    %v267 = vmul.f32 %v264, 1.442695
    %v268 = vpow.pop %v267
    %v269 = vsel %vm256, %v266, 0.0
    %270 = vadd.xlane.f32.xlu0 %v269
    %v271 = vpop.xlane.xlu0 %270
    %v272 = vsel %vm256, %v268, 0.0
    %273 = vadd.xlane.f32.xlu0 %v272
    %v274 = vpop.xlane.xlu0 %273
    %v275 = vrcp.pop %v271
    %v276 = vmul.f32 %v271, %v275
    %v277 = vsub.f32 1.0, %v276
    %v278 = vmul.f32 %v275, %v277
    %v279 = vadd.f32 %v275, %v278
    %vm280 = vweird.f32 %v271
    %vm281 = vweird.f32 %v275
    %vm282 = vmor %vm280, %vm281
    %v283 = vsel %vm282, %v275, %v279
    %v284 = vand.u32 2147483647, %v271
    %vm285 = vcmp.eq.f32.partialorder %v284, 8.507059e+37
    %v286 = vand.u32 %v271, 2147483648
    %v287 = vor.u32 1.1754944e-38, %v286
    %v288 = vsel %vm285, %v287, %v283
    %v289 = vmul.f32 %v266, %v288
    %v290 = vrcp.pop %v274
    %v291 = vmul.f32 %v274, %v290
    %v292 = vsub.f32 1.0, %v291
    %v293 = vmul.f32 %v290, %v292
    %v294 = vadd.f32 %v290, %v293
    %vm295 = vweird.f32 %v274
    %vm296 = vweird.f32 %v290
    %vm297 = vmor %vm295, %vm296
    %v298 = vsel %vm297, %v290, %v294
    %v299 = vand.u32 2147483647, %v274
    %vm300 = vcmp.eq.f32.partialorder %v299, 8.507059e+37
    %v301 = vand.u32 %v274, 2147483648
    %v302 = vor.u32 1.1754944e-38, %v301
    %v303 = vsel %vm300, %v302, %v298
    %v304 = vmul.f32 %v268, %v303
    %305 = vst [vmem:[#allocation1] ss:$2 sm:$0xff] %v194
    %v306 = vld.sshfl [vmem:[#allocation1] sm:$0xff pattern:$0x75316420]
    %307 = vrot.lane.b32.xlu0 %v306, 64
    %v308 = vpop.permute.xlu0 %307
    %vm309 = vcmask 31744
    %v311 = vsel %vm309, %v289, 0
    %vm313 = vcmask 1043456
    %v314 = vsel %vm313, %v308, 0
    %316 = vmatpush.msra.mxu0 0.0
    %317 = vmatpush.msra.mxu0 0.0
    %318 = vmatpush.msra.mxu0 0.0
    %319 = vmatpush.msra.mxu0 0.0
    %320 = vmatpush.msra.mxu0 0.0
    %321 = vmatpush.msra.mxu0 0.0
    %322 = vmatpush.msra.mxu0 0.0
    %323 = vmatpush.msra.mxu0 0.0
    %324 = vmatpush.msra.mxu0 0.0
    %325 = vmatpush.msra.mxu0 0.0
    %326 = vmatpush.msra.mxu0 0.0
    %327 = vmatpush.msra.mxu0 0.0
    %328 = vmatpush.msra.mxu0 0.0
    %329 = vmatpush.msra.mxu0 0.0
    %330 = vmatpush.msra.mxu0 0.0
    %331 = vmatpush.msra.mxu0 %v314
    %332 = vmatmul.f32.gmra.mxu0 %v311
    %v333 = vpop.f32.mrf.mxu0
    %v334 = vadd.f32 0.0, %v333
    %335 = vdwg.mxu0
    %336 = vst [vmem:[#allocation1] ss:$2 sm:$0xff] %v197
    %v337 = vld.sshfl [vmem:[#allocation1] sm:$0xff pattern:$0x75316420]
    %338 = vrot.lane.b32.xlu0 %v337, 64
    %v339 = vpop.permute.xlu0 %338
    %v341 = vsel %vm309, %v304, 0
    %v343 = vsel %vm313, %v339, 0
    %345 = vmatpush.msra.mxu0 0.0
    %346 = vmatpush.msra.mxu0 0.0
    %347 = vmatpush.msra.mxu0 0.0
    %348 = vmatpush.msra.mxu0 0.0
    %349 = vmatpush.msra.mxu0 0.0
    %350 = vmatpush.msra.mxu0 0.0
    %351 = vmatpush.msra.mxu0 0.0
    %352 = vmatpush.msra.mxu0 0.0
    %353 = vmatpush.msra.mxu0 0.0
    %354 = vmatpush.msra.mxu0 0.0
    %355 = vmatpush.msra.mxu0 0.0
    %356 = vmatpush.msra.mxu0 0.0
    %357 = vmatpush.msra.mxu0 0.0
    %358 = vmatpush.msra.mxu0 0.0
    %359 = vmatpush.msra.mxu0 0.0
    %360 = vmatpush.msra.mxu0 %v343
    %361 = vmatmul.f32.gmra.mxu0 %v341
    %v362 = vpop.f32.mrf.mxu0
    %v363 = vadd.f32 0.0, %v362
    %364 = vdwg.mxu0
    %v365 = vld [vmem:[%s8] sm:$0xff]
    %v366 = vld [vmem:[%s8 + $0x8] sm:$0xff]
    %v367 = vld [vmem:[%s8 + $0x10] sm:$0xff]
    %v368 = vld [vmem:[%s8 + $0x18] sm:$0xff]
    %371 = vst [vmem:[#allocation1] ss:$2 sm:$0xff] %v334
    %s372 = scalar_lea.vmem [#allocation1], 1
    %373 = vst [vmem:[%s372] ss:$2 sm:$0xff] %v363
    %v374 = vld.sshfl [vmem:[#allocation1] sm:$0xff pattern:$0x75316420]
    %v375 = vsel %vm173, %v374, 0
    %377 = vmatpush.msra.mxu0 0.0
    %378 = vmatpush.msra.mxu0 0.0
    %379 = vmatpush.msra.mxu0 0.0
    %380 = vmatpush.msra.mxu0 0.0
    %381 = vmatpush.msra.mxu0 0.0
    %382 = vmatpush.msra.mxu0 0.0
    %383 = vmatpush.msra.mxu0 0.0
    %384 = vmatpush.msra.mxu0 0.0
    %385 = vmatpush.msra.mxu0 0.0
    %386 = vmatpush.msra.mxu0 0.0
    %387 = vmatpush.msra.mxu0 0.0
    %388 = vmatpush.msra.mxu0 0.0
    %389 = vmatpush.msra.mxu0 %v368
    %390 = vmatpush.msra.mxu0 %v367
    %391 = vmatpush.msra.mxu0 %v366
    %392 = vmatpush.msra.mxu0 %v365
    %393 = vmatmul.f32.gmra.mxu0 %v375
    %v394 = vpop.f32.mrf.mxu0
    %v395 = vadd.f32 0.0, %v394
    %396 = vdwg.mxu0
    %v398 = vrot.slane %v395, 4
    %v400 = vadd.f32 %v161, %v395
    %v401 = vadd.f32 %v162, %v398
    %v402 = vld [vmem:[%s9] sm:$0xff]
    %v403 = vld [vmem:[%s9 + $0x8] sm:$0xff]
    %v404 = vld [vmem:[%s9 + $0x10] sm:$0xff]
    %v405 = vld [vmem:[%s9 + $0x18] sm:$0xff]
    %v406 = vld [vmem:[%s10] sm:$0x1]
    %v408 = vperm.slane %v406, 0
    %412 = vst [vmem:[#allocation1] ss:$2 sm:$0xff] %v400
    %s413 = scalar_lea.vmem [#allocation1], 1
    %414 = vst [vmem:[%s413] ss:$2 sm:$0xff] %v401
    %v415 = vld.sshfl [vmem:[#allocation1] sm:$0xff pattern:$0x75316420]
    %v416 = vsel %vm173, %v415, 0
    %418 = vmatpush.msra.mxu0 0.0
    %419 = vmatpush.msra.mxu0 0.0
    %420 = vmatpush.msra.mxu0 0.0
    %421 = vmatpush.msra.mxu0 0.0
    %422 = vmatpush.msra.mxu0 0.0
    %423 = vmatpush.msra.mxu0 0.0
    %424 = vmatpush.msra.mxu0 0.0
    %425 = vmatpush.msra.mxu0 0.0
    %426 = vmatpush.msra.mxu0 0.0
    %427 = vmatpush.msra.mxu0 0.0
    %428 = vmatpush.msra.mxu0 0.0
    %429 = vmatpush.msra.mxu0 0.0
    %430 = vmatpush.msra.mxu0 %v405
    %431 = vmatpush.msra.mxu0 %v404
    %432 = vmatpush.msra.mxu0 %v403
    %433 = vmatpush.msra.mxu0 %v402
    %434 = vmatmul.f32.gmra.mxu0 %v416
    %v435 = vpop.f32.mrf.mxu0
    %v436 = vadd.f32 %v408, %v435
    %437 = vdwg.mxu0
    %v438 = vmul.f32 %v436, %v436
    %v439 = vmul.f32 %v436, %v438
    %v440 = vmul.f32 %v439, 0.044715
    %v441 = vadd.f32 %v436, %v440
    %v442 = vmul.f32 %v441, 0.7978846
    %v443 = vtanh.pop %v442
    %v444 = vadd.f32 %v443, 1.0
    %v445 = vmul.f32 %v444, 0.5
    %v446 = vmul.f32 %v436, %v445
    %v447 = vld [vmem:[%s11] sm:$0xff]
    %v448 = vld [vmem:[%s11 + $0x8] sm:$0xff]
    %v449 = vld [vmem:[%s11 + $0x10] sm:$0xff]
    %v450 = vld [vmem:[%s11 + $0x18] sm:$0xff]
    %v451 = vld [vmem:[%s11 + $0x20] sm:$0xff]
    %v452 = vld [vmem:[%s11 + $0x28] sm:$0xff]
    %v453 = vld [vmem:[%s11 + $0x30] sm:$0xff]
    %v454 = vld [vmem:[%s11 + $0x38] sm:$0xff]
    %v455 = vld [vmem:[%s11 + $0x40] sm:$0xff]
    %v456 = vld [vmem:[%s11 + $0x48] sm:$0xff]
    %v457 = vld [vmem:[%s11 + $0x50] sm:$0xff]
    %v458 = vld [vmem:[%s11 + $0x58] sm:$0xff]
    %v459 = vld [vmem:[%s11 + $0x60] sm:$0xff]
    %v460 = vld [vmem:[%s11 + $0x68] sm:$0xff]
    %v461 = vld [vmem:[%s11 + $0x70] sm:$0xff]
    %v462 = vld [vmem:[%s11 + $0x78] sm:$0xff]
    %v463 = vld [vmem:[%s12] sm:$0x1]
    %v465 = vperm.slane %v463, 0
    %467 = vmatpush.msra.mxu0 %v462
    %468 = vmatpush.msra.mxu0 %v461
    %469 = vmatpush.msra.mxu0 %v460
    %470 = vmatpush.msra.mxu0 %v459
    %471 = vmatpush.msra.mxu0 %v458
    %472 = vmatpush.msra.mxu0 %v457
    %473 = vmatpush.msra.mxu0 %v456
    %474 = vmatpush.msra.mxu0 %v455
    %475 = vmatpush.msra.mxu0 %v454
    %476 = vmatpush.msra.mxu0 %v453
    %477 = vmatpush.msra.mxu0 %v452
    %478 = vmatpush.msra.mxu0 %v451
    %479 = vmatpush.msra.mxu0 %v450
    %480 = vmatpush.msra.mxu0 %v449
    %481 = vmatpush.msra.mxu0 %v448
    %482 = vmatpush.msra.mxu0 %v447
    %483 = vmatmul.f32.gmra.mxu0 %v446
    %v484 = vpop.f32.mrf.mxu0
    %v485 = vadd.f32 %v465, %v484
    %486 = vdwg.mxu0
    %v488 = vrot.slane %v485, 4
    %v490 = vadd.f32 %v400, %v485
    %v491 = vadd.f32 %v401, %v488
    %v492 = vld [vmem:[%s1] sm:$0xff]
    %v493 = vld [vmem:[%s1 + $0x8] sm:$0xff]
    %v494 = vld [vmem:[%s13] sm:$0xff]
    %v495 = vadd.f32 %v492, %v494
    %v496 = vadd.f32 %v493, %v494
    %v497 = vld [vmem:[%s14] sm:$0xff]
    %v498 = vld [vmem:[%s14 + $0x8] sm:$0xff]
    %v499 = vld [vmem:[%s14 + $0x10] sm:$0xff]
    %v500 = vld [vmem:[%s14 + $0x18] sm:$0xff]
    %v502 = vsel %vm173, %v495, 0
    %v505 = vsel %vm173, %v496, 0
    %507 = vmatpush.msra.mxu0 0.0
    %508 = vmatpush.msra.mxu0 0.0
    %509 = vmatpush.msra.mxu0 0.0
    %510 = vmatpush.msra.mxu0 0.0
    %511 = vmatpush.msra.mxu0 0.0
    %512 = vmatpush.msra.mxu0 0.0
    %513 = vmatpush.msra.mxu0 0.0
    %514 = vmatpush.msra.mxu0 0.0
    %515 = vmatpush.msra.mxu0 0.0
    %516 = vmatpush.msra.mxu0 0.0
    %517 = vmatpush.msra.mxu0 0.0
    %518 = vmatpush.msra.mxu0 0.0
    %519 = vmatpush.msra.mxu0 %v500
    %520 = vmatpush.msra.mxu0 %v499
    %521 = vmatpush.msra.mxu0 %v498
    %522 = vmatpush.msra.mxu0 %v497
    %523 = vmatmul.f32.gmra.mxu0 %v502
    %v524 = vpop.f32.mrf.mxu0
    %v525 = vadd.f32 0.0, %v524
    %526 = vmatmul.f32.gmra.mxu0 %v505
    %v527 = vpop.f32.mrf.mxu0
    %v528 = vadd.f32 0.0, %v527
    %529 = vdwg.mxu0
    %531 = vrot.lane.b32.xlu0 %v525, 96
    %v532 = vpop.permute.xlu0 %531
    %v533 = vsel %vm173, %v525, 0
    %v535 = vsel %vm173, %v532, 0
    %537 = vmatpush.xpose.msra.mxu0 0.0
    %538 = vmatpush.xpose.msra.mxu0 0.0
    %539 = vmatpush.xpose.msra.mxu0 0.0
    %540 = vmatpush.xpose.msra.mxu0 0.0
    %541 = vmatpush.xpose.msra.mxu0 0.0
    %542 = vmatpush.xpose.msra.mxu0 0.0
    %543 = vmatpush.xpose.msra.mxu0 0.0
    %544 = vmatpush.xpose.msra.mxu0 0.0
    %545 = vmatpush.xpose.msra.mxu0 0.0
    %546 = vmatpush.xpose.msra.mxu0 0.0
    %547 = vmatpush.xpose.msra.mxu0 0.0
    %548 = vmatpush.xpose.msra.mxu0 0.0
    %549 = vmatpush.xpose.msra.mxu0 0.0
    %550 = vmatpush.xpose.msra.mxu0 0.0
    %551 = vmatpush.xpose.msra.mxu0 0.0
    %552 = vmatpush.xpose.msra.mxu0 %v535
    %553 = vmatmul.f32.gmra.mxu0 %v533
    %v554 = vpop.f32.mrf.mxu0
    %v555 = vadd.f32 0.0, %v554
    %556 = vdwg.mxu0
    %558 = vrot.lane.b32.xlu0 %v528, 96
    %v559 = vpop.permute.xlu0 %558
    %v560 = vsel %vm173, %v528, 0
    %v562 = vsel %vm173, %v559, 0
    %564 = vmatpush.xpose.msra.mxu0 0.0
    %565 = vmatpush.xpose.msra.mxu0 0.0
    %566 = vmatpush.xpose.msra.mxu0 0.0
    %567 = vmatpush.xpose.msra.mxu0 0.0
    %568 = vmatpush.xpose.msra.mxu0 0.0
    %569 = vmatpush.xpose.msra.mxu0 0.0
    %570 = vmatpush.xpose.msra.mxu0 0.0
    %571 = vmatpush.xpose.msra.mxu0 0.0
    %572 = vmatpush.xpose.msra.mxu0 0.0
    %573 = vmatpush.xpose.msra.mxu0 0.0
    %574 = vmatpush.xpose.msra.mxu0 0.0
    %575 = vmatpush.xpose.msra.mxu0 0.0
    %576 = vmatpush.xpose.msra.mxu0 0.0
    %577 = vmatpush.xpose.msra.mxu0 0.0
    %578 = vmatpush.xpose.msra.mxu0 0.0
    %579 = vmatpush.xpose.msra.mxu0 %v562
    %580 = vmatmul.f32.gmra.mxu0 %v560
    %v581 = vpop.f32.mrf.mxu0
    %v582 = vadd.f32 0.0, %v581
    %583 = vdwg.mxu0
    %v584 = vmul.f32 %v555, 0.17677669
    %v585 = vmul.f32 %v582, 0.17677669
    %v586 = vlaneseq
    %v587 = vshrl.u32 %v586, 7
    %v588 = vlaneseq
    %v589 = vand.u32 %v588, 127
    %vm590 = vcmp.le.s32.totalorder %v589, %v587
    %v591 = vsel %vm590, 1, 0
    %vm592 = vcmp.eq.s32.totalorder %v591, 1
    %v593 = vsel %vm592, %v584, -1e+30
    %v594 = vsel %vm592, %v585, -1e+30
    %vm595 = vcmask 64512
    %v596 = vsel %vm595, %v593, -inf
    %597 = vmax.xlane.f32.xlu0 %v596
    %v598 = vpop.xlane.xlu0 %597
    %v599 = vsel %vm595, %v594, -inf
    %600 = vmax.xlane.f32.xlu0 %v599
    %v601 = vpop.xlane.xlu0 %600
    %v602 = vsub.f32 %v593, %v598
    %v603 = vsub.f32 %v594, %v601
    %v604 = vmul.f32 %v602, 1.442695
    %v605 = vpow.pop %v604
    %v606 = vmul.f32 %v603, 1.442695
    %v607 = vpow.pop %v606
    %v608 = vsel %vm595, %v605, 0.0
    %609 = vadd.xlane.f32.xlu0 %v608
    %v610 = vpop.xlane.xlu0 %609
    %v611 = vsel %vm595, %v607, 0.0
    %612 = vadd.xlane.f32.xlu0 %v611
    %v613 = vpop.xlane.xlu0 %612
    %v614 = vrcp.pop %v610
    %v615 = vmul.f32 %v610, %v614
    %v616 = vsub.f32 1.0, %v615
    %v617 = vmul.f32 %v614, %v616
    %v618 = vadd.f32 %v614, %v617
    %vm619 = vweird.f32 %v610
    %vm620 = vweird.f32 %v614
    %vm621 = vmor %vm619, %vm620
    %v622 = vsel %vm621, %v614, %v618
    %v623 = vand.u32 2147483647, %v610
    %vm624 = vcmp.eq.f32.partialorder %v623, 8.507059e+37
    %v625 = vand.u32 %v610, 2147483648
    %v626 = vor.u32 1.1754944e-38, %v625
    %v627 = vsel %vm624, %v626, %v622
    %v628 = vmul.f32 %v605, %v627
    %v629 = vrcp.pop %v613
    %v630 = vmul.f32 %v613, %v629
    %v631 = vsub.f32 1.0, %v630
    %v632 = vmul.f32 %v629, %v631
    %v633 = vadd.f32 %v629, %v632
    %vm634 = vweird.f32 %v613
    %vm635 = vweird.f32 %v629
    %vm636 = vmor %vm634, %vm635
    %v637 = vsel %vm636, %v629, %v633
    %v638 = vand.u32 2147483647, %v613
    %vm639 = vcmp.eq.f32.partialorder %v638, 8.507059e+37
    %v640 = vand.u32 %v613, 2147483648
    %v641 = vor.u32 1.1754944e-38, %v640
    %v642 = vsel %vm639, %v641, %v637
    %v643 = vmul.f32 %v607, %v642
    %644 = vrot.lane.b32.xlu0 %v525, 64
    %v645 = vpop.permute.xlu0 %644
    %v648 = vsel %vm595, %v628, 0
    %650 = vmatpush.msra.mxu0 0.0
    %651 = vmatpush.msra.mxu0 0.0
    %652 = vmatpush.msra.mxu0 0.0
    %653 = vmatpush.msra.mxu0 0.0
    %654 = vmatpush.msra.mxu0 0.0
    %655 = vmatpush.msra.mxu0 0.0
    %656 = vmatpush.msra.mxu0 0.0
    %657 = vmatpush.msra.mxu0 0.0
    %658 = vmatpush.msra.mxu0 0.0
    %659 = vmatpush.msra.mxu0 0.0
    %660 = vmatpush.msra.mxu0 0.0
    %661 = vmatpush.msra.mxu0 0.0
    %662 = vmatpush.msra.mxu0 0.0
    %663 = vmatpush.msra.mxu0 0.0
    %664 = vmatpush.msra.mxu0 0.0
    %665 = vmatpush.msra.mxu0 %v645
    %666 = vmatmul.f32.gmra.mxu0 %v648
    %v667 = vpop.f32.mrf.mxu0
    %v668 = vadd.f32 0.0, %v667
    %669 = vdwg.mxu0
    %670 = vrot.lane.b32.xlu0 %v528, 64
    %v671 = vpop.permute.xlu0 %670
    %v674 = vsel %vm595, %v643, 0
    %676 = vmatpush.msra.mxu0 0.0
    %677 = vmatpush.msra.mxu0 0.0
    %678 = vmatpush.msra.mxu0 0.0
    %679 = vmatpush.msra.mxu0 0.0
    %680 = vmatpush.msra.mxu0 0.0
    %681 = vmatpush.msra.mxu0 0.0
    %682 = vmatpush.msra.mxu0 0.0
    %683 = vmatpush.msra.mxu0 0.0
    %684 = vmatpush.msra.mxu0 0.0
    %685 = vmatpush.msra.mxu0 0.0
    %686 = vmatpush.msra.mxu0 0.0
    %687 = vmatpush.msra.mxu0 0.0
    %688 = vmatpush.msra.mxu0 0.0
    %689 = vmatpush.msra.mxu0 0.0
    %690 = vmatpush.msra.mxu0 0.0
    %691 = vmatpush.msra.mxu0 %v671
    %692 = vmatmul.f32.gmra.mxu0 %v674
    %v693 = vpop.f32.mrf.mxu0
    %v694 = vadd.f32 0.0, %v693
    %695 = vdwg.mxu0
    %v696 = vld [vmem:[%s15] sm:$0xff]
    %v697 = vld [vmem:[%s15 + $0x8] sm:$0xff]
    %v698 = vld [vmem:[%s15 + $0x10] sm:$0xff]
    %v699 = vld [vmem:[%s15 + $0x18] sm:$0xff]
    %v701 = vsel %vm173, %v668, 0
    %v704 = vsel %vm173, %v694, 0
    %706 = vmatpush.msra.mxu0 0.0
    %707 = vmatpush.msra.mxu0 0.0
    %708 = vmatpush.msra.mxu0 0.0
    %709 = vmatpush.msra.mxu0 0.0
    %710 = vmatpush.msra.mxu0 0.0
    %711 = vmatpush.msra.mxu0 0.0
    %712 = vmatpush.msra.mxu0 0.0
    %713 = vmatpush.msra.mxu0 0.0
    %714 = vmatpush.msra.mxu0 0.0
    %715 = vmatpush.msra.mxu0 0.0
    %716 = vmatpush.msra.mxu0 0.0
    %717 = vmatpush.msra.mxu0 0.0
    %718 = vmatpush.msra.mxu0 %v699
    %719 = vmatpush.msra.mxu0 %v698
    %720 = vmatpush.msra.mxu0 %v697
    %721 = vmatpush.msra.mxu0 %v696
    %722 = vmatmul.f32.gmra.mxu0 %v701
    %v723 = vpop.f32.mrf.mxu0
    %v724 = vadd.f32 0.0, %v723
    %725 = vmatmul.f32.gmra.mxu0 %v704
    %v726 = vpop.f32.mrf.mxu0
    %v727 = vadd.f32 0.0, %v726
    %728 = vdwg.mxu0
    %v729 = vadd.f32 %v495, %v724
    %v730 = vadd.f32 %v496, %v727
    %v731 = vld [vmem:[%s16] sm:$0xff]
    %v732 = vld [vmem:[%s16 + $0x8] sm:$0xff]
    %v733 = vld [vmem:[%s16 + $0x10] sm:$0xff]
    %v734 = vld [vmem:[%s16 + $0x18] sm:$0xff]
    %v736 = vsel %vm173, %v729, 0
    %v739 = vsel %vm173, %v730, 0
    %741 = vmatpush.msra.mxu0 0.0
    %742 = vmatpush.msra.mxu0 0.0
    %743 = vmatpush.msra.mxu0 0.0
    %744 = vmatpush.msra.mxu0 0.0
    %745 = vmatpush.msra.mxu0 0.0
    %746 = vmatpush.msra.mxu0 0.0
    %747 = vmatpush.msra.mxu0 0.0
    %748 = vmatpush.msra.mxu0 0.0
    %749 = vmatpush.msra.mxu0 0.0
    %750 = vmatpush.msra.mxu0 0.0
    %751 = vmatpush.msra.mxu0 0.0
    %752 = vmatpush.msra.mxu0 0.0
    %753 = vmatpush.msra.mxu0 %v734
    %754 = vmatpush.msra.mxu0 %v733
    %755 = vmatpush.msra.mxu0 %v732
    %756 = vmatpush.msra.mxu0 %v731
    %757 = vmatmul.f32.gmra.mxu0 %v736
    %v758 = vpop.f32.mrf.mxu0
    %v759 = vadd.f32 0.0, %v758
    %760 = vmatmul.f32.gmra.mxu0 %v739
    %v761 = vpop.f32.mrf.mxu0
    %v762 = vadd.f32 0.0, %v761
    %763 = vdwg.mxu0
    %v764 = vld [vmem:[%s17] sm:$0xff]
    %v765 = vld [vmem:[%s17 + $0x8] sm:$0xff]
    %v766 = vld [vmem:[%s17 + $0x10] sm:$0xff]
    %v767 = vld [vmem:[%s17 + $0x18] sm:$0xff]
    %770 = vst [vmem:[#allocation1] ss:$2 sm:$0xff] %v490
    %s771 = scalar_lea.vmem [#allocation1], 1
    %772 = vst [vmem:[%s771] ss:$2 sm:$0xff] %v491
    %v773 = vld.sshfl [vmem:[#allocation1] sm:$0xff pattern:$0x75316420]
    %v774 = vsel %vm173, %v773, 0
    %776 = vmatpush.msra.mxu0 0.0
    %777 = vmatpush.msra.mxu0 0.0
    %778 = vmatpush.msra.mxu0 0.0
    %779 = vmatpush.msra.mxu0 0.0
    %780 = vmatpush.msra.mxu0 0.0
    %781 = vmatpush.msra.mxu0 0.0
    %782 = vmatpush.msra.mxu0 0.0
    %783 = vmatpush.msra.mxu0 0.0
    %784 = vmatpush.msra.mxu0 0.0
    %785 = vmatpush.msra.mxu0 0.0
    %786 = vmatpush.msra.mxu0 0.0
    %787 = vmatpush.msra.mxu0 0.0
    %788 = vmatpush.msra.mxu0 %v767
    %789 = vmatpush.msra.mxu0 %v766
    %790 = vmatpush.msra.mxu0 %v765
    %791 = vmatpush.msra.mxu0 %v764
    %792 = vmatmul.f32.gmra.mxu0 %v774
    %v793 = vpop.f32.mrf.mxu0
    %v794 = vadd.f32 0.0, %v793
    %795 = vdwg.mxu0
    %v797 = vrot.slane %v794, 4
    %v799 = vsel %vm173, %v759, 0
    %v801 = vsel %vm173, %v794, 0
    %803 = vmatpush.xpose.msra.mxu0 0.0
    %804 = vmatpush.xpose.msra.mxu0 0.0
    %805 = vmatpush.xpose.msra.mxu0 0.0
    %806 = vmatpush.xpose.msra.mxu0 0.0
    %807 = vmatpush.xpose.msra.mxu0 0.0
    %808 = vmatpush.xpose.msra.mxu0 0.0
    %809 = vmatpush.xpose.msra.mxu0 0.0
    %810 = vmatpush.xpose.msra.mxu0 0.0
    %811 = vmatpush.xpose.msra.mxu0 0.0
    %812 = vmatpush.xpose.msra.mxu0 0.0
    %813 = vmatpush.xpose.msra.mxu0 0.0
    %814 = vmatpush.xpose.msra.mxu0 0.0
    %815 = vmatpush.xpose.msra.mxu0 0.0
    %816 = vmatpush.xpose.msra.mxu0 0.0
    %817 = vmatpush.xpose.msra.mxu0 0.0
    %818 = vmatpush.xpose.msra.mxu0 %v801
    %819 = vmatmul.f32.gmra.mxu0 %v799
    %v820 = vpop.f32.mrf.mxu0
    %v821 = vadd.f32 0.0, %v820
    %822 = vdwg.mxu0
    %v824 = vsel %vm173, %v762, 0
    %v826 = vsel %vm173, %v797, 0
    %828 = vmatpush.xpose.msra.mxu0 0.0
    %829 = vmatpush.xpose.msra.mxu0 0.0
    %830 = vmatpush.xpose.msra.mxu0 0.0
    %831 = vmatpush.xpose.msra.mxu0 0.0
    %832 = vmatpush.xpose.msra.mxu0 0.0
    %833 = vmatpush.xpose.msra.mxu0 0.0
    %834 = vmatpush.xpose.msra.mxu0 0.0
    %835 = vmatpush.xpose.msra.mxu0 0.0
    %836 = vmatpush.xpose.msra.mxu0 0.0
    %837 = vmatpush.xpose.msra.mxu0 0.0
    %838 = vmatpush.xpose.msra.mxu0 0.0
    %839 = vmatpush.xpose.msra.mxu0 0.0
    %840 = vmatpush.xpose.msra.mxu0 0.0
    %841 = vmatpush.xpose.msra.mxu0 0.0
    %842 = vmatpush.xpose.msra.mxu0 0.0
    %843 = vmatpush.xpose.msra.mxu0 %v826
    %844 = vmatmul.f32.gmra.mxu0 %v824
    %v845 = vpop.f32.mrf.mxu0
    %v846 = vadd.f32 0.0, %v845
    %847 = vdwg.mxu0
    %v848 = vmul.f32 %v821, 0.17677669
    %v849 = vmul.f32 %v846, 0.17677669
    %v850 = vsel %vm309, %v848, -inf
    %851 = vmax.xlane.f32.xlu0 %v850
    %v852 = vpop.xlane.xlu0 %851
    %v853 = vsel %vm309, %v849, -inf
    %854 = vmax.xlane.f32.xlu0 %v853
    %v855 = vpop.xlane.xlu0 %854
    %v856 = vsub.f32 %v848, %v852
    %v857 = vsub.f32 %v849, %v855
    %v858 = vmul.f32 %v856, 1.442695
    %v859 = vpow.pop %v858
    %v860 = vmul.f32 %v857, 1.442695
    %v861 = vpow.pop %v860
    %v862 = vsel %vm309, %v859, 0.0
    %863 = vadd.xlane.f32.xlu0 %v862
    %v864 = vpop.xlane.xlu0 %863
    %v865 = vsel %vm309, %v861, 0.0
    %866 = vadd.xlane.f32.xlu0 %v865
    %v867 = vpop.xlane.xlu0 %866
    %v868 = vrcp.pop %v864
    %v869 = vmul.f32 %v864, %v868
    %v870 = vsub.f32 1.0, %v869
    %v871 = vmul.f32 %v868, %v870
    %v872 = vadd.f32 %v868, %v871
    %vm873 = vweird.f32 %v864
    %vm874 = vweird.f32 %v868
    %vm875 = vmor %vm873, %vm874
    %v876 = vsel %vm875, %v868, %v872
    %v877 = vand.u32 2147483647, %v864
    %vm878 = vcmp.eq.f32.partialorder %v877, 8.507059e+37
    %v879 = vand.u32 %v864, 2147483648
    %v880 = vor.u32 1.1754944e-38, %v879
    %v881 = vsel %vm878, %v880, %v876
    %v882 = vmul.f32 %v859, %v881
    %v883 = vrcp.pop %v867
    %v884 = vmul.f32 %v867, %v883
    %v885 = vsub.f32 1.0, %v884
    %v886 = vmul.f32 %v883, %v885
    %v887 = vadd.f32 %v883, %v886
    %vm888 = vweird.f32 %v867
    %vm889 = vweird.f32 %v883
    %vm890 = vmor %vm888, %vm889
    %v891 = vsel %vm890, %v883, %v887
    %v892 = vand.u32 2147483647, %v867
    %vm893 = vcmp.eq.f32.partialorder %v892, 8.507059e+37
    %v894 = vand.u32 %v867, 2147483648
    %v895 = vor.u32 1.1754944e-38, %v894
    %v896 = vsel %vm893, %v895, %v891
    %v897 = vmul.f32 %v861, %v896
    %898 = vst [vmem:[#allocation1] ss:$2 sm:$0xff] %v794
    %v899 = vld.sshfl [vmem:[#allocation1] sm:$0xff pattern:$0x75316420]
    %900 = vrot.lane.b32.xlu0 %v899, 96
    %v901 = vpop.permute.xlu0 %900
    %v903 = vsel %vm309, %v882, 0
    %v905 = vsel %vm313, %v901, 0
    %907 = vmatpush.msra.mxu0 0.0
    %908 = vmatpush.msra.mxu0 0.0
    %909 = vmatpush.msra.mxu0 0.0
    %910 = vmatpush.msra.mxu0 0.0
    %911 = vmatpush.msra.mxu0 0.0
    %912 = vmatpush.msra.mxu0 0.0
    %913 = vmatpush.msra.mxu0 0.0
    %914 = vmatpush.msra.mxu0 0.0
    %915 = vmatpush.msra.mxu0 0.0
    %916 = vmatpush.msra.mxu0 0.0
    %917 = vmatpush.msra.mxu0 0.0
    %918 = vmatpush.msra.mxu0 0.0
    %919 = vmatpush.msra.mxu0 0.0
    %920 = vmatpush.msra.mxu0 0.0
    %921 = vmatpush.msra.mxu0 0.0
    %922 = vmatpush.msra.mxu0 %v905
    %923 = vmatmul.f32.gmra.mxu0 %v903
    %v924 = vpop.f32.mrf.mxu0
    %v925 = vadd.f32 0.0, %v924
    %926 = vdwg.mxu0
    %927 = vst [vmem:[#allocation1] ss:$2 sm:$0xff] %v797
    %v928 = vld.sshfl [vmem:[#allocation1] sm:$0xff pattern:$0x75316420]
    %929 = vrot.lane.b32.xlu0 %v928, 96
    %v930 = vpop.permute.xlu0 %929
    %v932 = vsel %vm309, %v897, 0
    %v934 = vsel %vm313, %v930, 0
    %936 = vmatpush.msra.mxu0 0.0
    %937 = vmatpush.msra.mxu0 0.0
    %938 = vmatpush.msra.mxu0 0.0
    %939 = vmatpush.msra.mxu0 0.0
    %940 = vmatpush.msra.mxu0 0.0
    %941 = vmatpush.msra.mxu0 0.0
    %942 = vmatpush.msra.mxu0 0.0
    %943 = vmatpush.msra.mxu0 0.0
    %944 = vmatpush.msra.mxu0 0.0
    %945 = vmatpush.msra.mxu0 0.0
    %946 = vmatpush.msra.mxu0 0.0
    %947 = vmatpush.msra.mxu0 0.0
    %948 = vmatpush.msra.mxu0 0.0
    %949 = vmatpush.msra.mxu0 0.0
    %950 = vmatpush.msra.mxu0 0.0
    %951 = vmatpush.msra.mxu0 %v934
    %952 = vmatmul.f32.gmra.mxu0 %v932
    %v953 = vpop.f32.mrf.mxu0
    %v954 = vadd.f32 0.0, %v953
    %955 = vdwg.mxu0
    %v956 = vld [vmem:[%s18] sm:$0xff]
    %v957 = vld [vmem:[%s18 + $0x8] sm:$0xff]
    %v958 = vld [vmem:[%s18 + $0x10] sm:$0xff]
    %v959 = vld [vmem:[%s18 + $0x18] sm:$0xff]
    %v961 = vsel %vm173, %v925, 0
    %v964 = vsel %vm173, %v954, 0
    %966 = vmatpush.msra.mxu0 0.0
    %967 = vmatpush.msra.mxu0 0.0
    %968 = vmatpush.msra.mxu0 0.0
    %969 = vmatpush.msra.mxu0 0.0
    %970 = vmatpush.msra.mxu0 0.0
    %971 = vmatpush.msra.mxu0 0.0
    %972 = vmatpush.msra.mxu0 0.0
    %973 = vmatpush.msra.mxu0 0.0
    %974 = vmatpush.msra.mxu0 0.0
    %975 = vmatpush.msra.mxu0 0.0
    %976 = vmatpush.msra.mxu0 0.0
    %977 = vmatpush.msra.mxu0 0.0
    %978 = vmatpush.msra.mxu0 %v959
    %979 = vmatpush.msra.mxu0 %v958
    %980 = vmatpush.msra.mxu0 %v957
    %981 = vmatpush.msra.mxu0 %v956
    %982 = vmatmul.f32.gmra.mxu0 %v961
    %v983 = vpop.f32.mrf.mxu0
    %v984 = vadd.f32 0.0, %v983
    %985 = vmatmul.f32.gmra.mxu0 %v964
    %v986 = vpop.f32.mrf.mxu0
    %v987 = vadd.f32 0.0, %v986
    %988 = vdwg.mxu0
    %v989 = vadd.f32 %v729, %v984
    %v990 = vadd.f32 %v730, %v987
    %v991 = vld [vmem:[%s19] sm:$0xff]
    %v992 = vld [vmem:[%s19 + $0x8] sm:$0xff]
    %v993 = vld [vmem:[%s19 + $0x10] sm:$0xff]
    %v994 = vld [vmem:[%s19 + $0x18] sm:$0xff]
    %v995 = vld [vmem:[%s20] sm:$0x1]
    %v997 = vperm.slane %v995, 0
    %v1000 = vsel %vm173, %v989, 0
    %v1003 = vsel %vm173, %v990, 0
    %1005 = vmatpush.msra.mxu0 0.0
    %1006 = vmatpush.msra.mxu0 0.0
    %1007 = vmatpush.msra.mxu0 0.0
    %1008 = vmatpush.msra.mxu0 0.0
    %1009 = vmatpush.msra.mxu0 0.0
    %1010 = vmatpush.msra.mxu0 0.0
    %1011 = vmatpush.msra.mxu0 0.0
    %1012 = vmatpush.msra.mxu0 0.0
    %1013 = vmatpush.msra.mxu0 0.0
    %1014 = vmatpush.msra.mxu0 0.0
    %1015 = vmatpush.msra.mxu0 0.0
    %1016 = vmatpush.msra.mxu0 0.0
    %1017 = vmatpush.msra.mxu0 %v994
    %1018 = vmatpush.msra.mxu0 %v993
    %1019 = vmatpush.msra.mxu0 %v992
    %1020 = vmatpush.msra.mxu0 %v991
    %1021 = vmatmul.f32.gmra.mxu0 %v1000
    %v1022 = vpop.f32.mrf.mxu0
    %v1023 = vadd.f32 %v997, %v1022
    %1024 = vmatmul.f32.gmra.mxu0 %v1003
    %v1025 = vpop.f32.mrf.mxu0
    %v1026 = vadd.f32 %v997, %v1025
    %1027 = vdwg.mxu0
    %v1028 = vmul.f32 %v1023, %v1023
    %v1029 = vmul.f32 %v1026, %v1026
    %v1030 = vmul.f32 %v1023, %v1028
    %v1031 = vmul.f32 %v1026, %v1029
    %v1032 = vmul.f32 %v1030, 0.044715
    %v1033 = vmul.f32 %v1031, 0.044715
    %v1034 = vadd.f32 %v1023, %v1032
    %v1035 = vadd.f32 %v1026, %v1033
    %v1036 = vmul.f32 %v1034, 0.7978846
    %v1037 = vmul.f32 %v1035, 0.7978846
    %v1038 = vtanh.pop %v1036
    %v1039 = vtanh.pop %v1037
    %v1040 = vadd.f32 %v1038, 1.0
    %v1041 = vadd.f32 %v1039, 1.0
    %v1042 = vmul.f32 %v1040, 0.5
    %v1043 = vmul.f32 %v1041, 0.5
    %v1044 = vmul.f32 %v1023, %v1042
    %v1045 = vmul.f32 %v1026, %v1043
    %v1046 = vld [vmem:[%s21] sm:$0xff]
    %v1047 = vld [vmem:[%s21 + $0x8] sm:$0xff]
    %v1048 = vld [vmem:[%s21 + $0x10] sm:$0xff]
    %v1049 = vld [vmem:[%s21 + $0x18] sm:$0xff]
    %v1050 = vld [vmem:[%s21 + $0x20] sm:$0xff]
    %v1051 = vld [vmem:[%s21 + $0x28] sm:$0xff]
    %v1052 = vld [vmem:[%s21 + $0x30] sm:$0xff]
    %v1053 = vld [vmem:[%s21 + $0x38] sm:$0xff]
    %v1054 = vld [vmem:[%s21 + $0x40] sm:$0xff]
    %v1055 = vld [vmem:[%s21 + $0x48] sm:$0xff]
    %v1056 = vld [vmem:[%s21 + $0x50] sm:$0xff]
    %v1057 = vld [vmem:[%s21 + $0x58] sm:$0xff]
    %v1058 = vld [vmem:[%s21 + $0x60] sm:$0xff]
    %v1059 = vld [vmem:[%s21 + $0x68] sm:$0xff]
    %v1060 = vld [vmem:[%s21 + $0x70] sm:$0xff]
    %v1061 = vld [vmem:[%s21 + $0x78] sm:$0xff]
    %1062 = vmatpush.msra.mxu0 %v1061
    %1063 = vmatpush.msra.mxu0 %v1060
    %1064 = vmatpush.msra.mxu0 %v1059
    %1065 = vmatpush.msra.mxu0 %v1058
    %1066 = vmatpush.msra.mxu0 %v1057
    %1067 = vmatpush.msra.mxu0 %v1056
    %1068 = vmatpush.msra.mxu0 %v1055
    %1069 = vmatpush.msra.mxu0 %v1054
    %1070 = vmatpush.msra.mxu0 %v1053
    %1071 = vmatpush.msra.mxu0 %v1052
    %1072 = vmatpush.msra.mxu0 %v1051
    %1073 = vmatpush.msra.mxu0 %v1050
    %1074 = vmatpush.msra.mxu0 %v1049
    %1075 = vmatpush.msra.mxu0 %v1048
    %1076 = vmatpush.msra.mxu0 %v1047
    %1077 = vmatpush.msra.mxu0 %v1046
    %1078 = vmatmul.f32.gmra.mxu0 %v1044
    %v1079 = vpop.f32.mrf.mxu0
    %v1080 = vadd.f32 0.0, %v1079
    %1081 = vmatmul.f32.gmra.mxu0 %v1045
    %v1082 = vpop.f32.mrf.mxu0
    %v1083 = vadd.f32 0.0, %v1082
    %1084 = vdwg.mxu0
    %v1085 = vadd.f32 %v989, %v1080
    %v1086 = vadd.f32 %v990, %v1083
    %v1087 = vld [vmem:[%s22] sm:$0x1]
    %v1089 = vperm.slane %v1087, 0
    %v1091 = vadd.f32 %v1085, %v1089
    %v1092 = vadd.f32 %v1086, %v1089
    %v1093 = vld [vmem:[%s23] sm:$0xff]
    %v1094 = vld [vmem:[%s23 + $0x8] sm:$0xff]
    %v1095 = vld [vmem:[%s23 + $0x10] sm:$0xff]
    %v1096 = vld [vmem:[%s23 + $0x18] sm:$0xff]
    %v1097 = vld [vmem:[%s24] sm:$0x1]
    %v1099 = vperm.slane %v1097, 0
    %v1102 = vsel %vm173, %v1091, 0
    %v1105 = vsel %vm173, %v1092, 0
    %1107 = vmatpush.msra.mxu0 0.0
    %1108 = vmatpush.msra.mxu0 0.0
    %1109 = vmatpush.msra.mxu0 0.0
    %1110 = vmatpush.msra.mxu0 0.0
    %1111 = vmatpush.msra.mxu0 0.0
    %1112 = vmatpush.msra.mxu0 0.0
    %1113 = vmatpush.msra.mxu0 0.0
    %1114 = vmatpush.msra.mxu0 0.0
    %1115 = vmatpush.msra.mxu0 0.0
    %1116 = vmatpush.msra.mxu0 0.0
    %1117 = vmatpush.msra.mxu0 0.0
    %1118 = vmatpush.msra.mxu0 0.0
    %1119 = vmatpush.msra.mxu0 %v1096
    %1120 = vmatpush.msra.mxu0 %v1095
    %1121 = vmatpush.msra.mxu0 %v1094
    %1122 = vmatpush.msra.mxu0 %v1093
    %1123 = vmatmul.f32.gmra.mxu0 %v1102
    %v1124 = vpop.f32.mrf.mxu0
    %v1125 = vadd.f32 %v1099, %v1124
    %1126 = vmatmul.f32.gmra.mxu0 %v1105
    %v1127 = vpop.f32.mrf.mxu0
    %v1128 = vadd.f32 %v1099, %v1127
    %1129 = vdwg.mxu0
    %1130 = vmax.xlane.f32.xlu0 %v1125
    %v1131 = vpop.xlane.xlu0 %1130
    %1132 = vmax.xlane.f32.xlu0 %v1128
    %v1133 = vpop.xlane.xlu0 %1132
    %v1134 = vsub.f32 %v1125, %v1131
    %v1135 = vsub.f32 %v1128, %v1133
    %v1136 = vmul.f32 %v1134, 1.442695
    %v1137 = vpow.pop %v1136
    %v1138 = vmul.f32 %v1135, 1.442695
    %v1139 = vpow.pop %v1138
    %1140 = vadd.xlane.f32.xlu0 %v1137
    %v1141 = vpop.xlane.xlu0 %1140
    %1142 = vadd.xlane.f32.xlu0 %v1139
    %v1143 = vpop.xlane.xlu0 %1142
    %v1144 = vlog2.pop %v1141
    %v1145 = vmul.f32 %v1144, 0.6931472
    %v1146 = vlog2.pop %v1143
    %v1147 = vmul.f32 %v1146, 0.6931472
    %v1148 = vadd.f32 %v1131, %v1145
    %v1149 = vadd.f32 %v1133, %v1147
    %v1150 = vsub.f32 %v1125, %v1148
    %v1151 = vsub.f32 %v1128, %v1149
    %v1152 = vld [vmem:[%s2] sm:$0xff]
    %v1153 = vld [vmem:[%s2 + $0x8] sm:$0xff]
    %1154 = vset.pattern.permute.xlu0 0
    %1155 = vperm.xlu0 %1154, %v1152
    %v1156 = vpop.permute.xlu0 %1155
    %1157 = vset.pattern.permute.xlu0 0
    %1158 = vperm.xlu0 %1157, %v1153
    %v1159 = vpop.permute.xlu0 %1158
    %vm1160 = vcmp.eq.s32.totalorder %v589, %v1156
    %vm1161 = vcmp.eq.s32.totalorder %v589, %v1159
    %v1162 = vsel %vm1160, 1, 0
    %v1163 = vsel %vm1161, 1, 0
    %v1164 = vcvt.s32.f32 %v1162
    %v1165 = vcvt.s32.f32 %v1163
    %v1166 = vsub.f32 0.0, %v1150
    %v1167 = vsub.f32 0.0, %v1151
    %v1168 = vmul.f32 %v1164, %v1166
    %v1169 = vmul.f32 %v1165, %v1167
    %1170 = vadd.xlane.f32.xlu0 %v1168
    %v1171 = vpop.xlane.xlu0 %1170
    %1172 = vadd.xlane.f32.xlu0 %v1169
    %v1173 = vpop.xlane.xlu0 %1172
    %vm1174 = vcmp.ge.s32.totalorder %v1152, 0
    %vm1175 = vcmp.ge.s32.totalorder %v1153, 0
    %v1176 = vsel %vm1174, 1, 0
    %v1177 = vsel %vm1175, 1, 0
    %v1178 = vcvt.s32.f32 %v1176
    %v1179 = vcvt.s32.f32 %v1177
    %v1180 = vmul.f32 %v1171, %v1178
    %v1181 = vmul.f32 %v1173, %v1179
    %vm1182 = vcmask 7168
    %v1183 = vsel %vm1182, %v1180, 0.0
    %v1184 = vsel %vm1182, %v1181, 0.0
    %v1185 = vadd.f32 %v1183, %v1184
    %v1186 = vrot.slane %v1185, 4
    %v1187 = vadd.f32 %v1185, %v1186
    %v1188 = vrot.slane %v1187, 2
    %v1189 = vadd.f32 %v1187, %v1188
    %v1190 = vrot.slane %v1189, 1
    %v1191 = vadd.f32 %v1189, %v1190
    %v1192 = vsel %vm1182, %v1178, 0.0
    %v1193 = vsel %vm1182, %v1179, 0.0
    %v1194 = vadd.f32 %v1192, %v1193
    %v1195 = vrot.slane %v1194, 4
    %v1196 = vadd.f32 %v1194, %v1195
    %v1197 = vrot.slane %v1196, 2
    %v1198 = vadd.f32 %v1196, %v1197
    %v1199 = vrot.slane %v1198, 1
    %v1200 = vadd.f32 %v1198, %v1199
    %v1201 = vmax.f32 %v1200, 1.0
    %v1202 = vrcp.pop %v1201
    %v1203 = vmul.f32 %v1201, %v1202
    %v1204 = vsub.f32 1.0, %v1203
    %v1205 = vmul.f32 %v1202, %v1204
    %v1206 = vadd.f32 %v1202, %v1205
    %vm1207 = vweird.f32 %v1201
    %vm1208 = vweird.f32 %v1202
    %vm1209 = vmor %vm1207, %vm1208
    %v1210 = vsel %vm1209, %v1202, %v1206
    %v1211 = vand.u32 2147483647, %v1201
    %vm1212 = vcmp.eq.f32.partialorder %v1211, 8.507059e+37
    %v1213 = vand.u32 %v1201, 2147483648
    %v1214 = vor.u32 1.1754944e-38, %v1213
    %v1215 = vsel %vm1212, %v1214, %v1210
    %v1216 = vmul.f32 %v1191, %v1215
    %vm1217 = vcmask 0
    %1218 = vst.msk [vmem:[#allocation2] sm:$0x1] %vm1217, %v1216
    %v1219 = vld [vmem:[%s3] sm:$0xff]
    %v1220 = vld [vmem:[%s3 + $0x8] sm:$0xff]
    %vm1221 = vcmp.ge.f32.partialorder %v1219, 0.1
    %vm1222 = vcmp.ge.f32.partialorder %v1220, 0.1
    %v1223 = vsel %vm1221, 1, 0
    %v1224 = vsel %vm1222, 1, 0
    %v1225 = vcvt.s32.f32 %v1223
    %v1226 = vcvt.s32.f32 %v1224
    %v1227 = vmul.f32 %v1125, %v1225
    %v1228 = vmul.f32 %v1128, %v1226
    %v1229 = vmul.f32 %v1227, 1.1111112
    %v1230 = vmul.f32 %v1228, 1.1111112
    %1231 = vst [vmem:[%s26] sm:$0xff] %v1229
    %1232 = vst [vmem:[%s26 + $0x8] sm:$0xff] %v1230
    // Predicated region
    $region102: #{trocr_forward.1} parent=1 // pred_check
      _
    $region103: #{trocr_forward.1} parent=1 // pred_check_branch
      %1234 = sbr.rel (0) target = $region105
    $region104: #{trocr_forward.1} parent=1 // pred_region
      %1236 = vsyncadd [#allocation3], 0
      %s1238 = sshll.u32 [#allocation2], 4
      %s1239 = int_to_ptr.vmem [resolvable:$true] %s1238
      %s1240 = sshll.u32 %s25, 4
      %s1241 = int_to_ptr.hbm [resolvable:$true] %s1240
      %1243 = dma.vmem_to_hbm [thread:$0]  %s1239, 16, %s1241, [#allocation3]
    $region105: #{trocr_forward.1} parent=1 // pred_fallthru
      _
    // Predicated region
    $region106: #{trocr_forward.1} parent=1 // pred_check
      _
    $region107: #{trocr_forward.1} parent=1 // pred_check_branch
      %1245 = sbr.rel (0) target = $region109
    $region108: #{trocr_forward.1} parent=1 // pred_region
      _
    $region109: #{trocr_forward.1} parent=1 // pred_fallthru
      _
    // Predicated region
    $region110: #{trocr_forward.1} parent=1 // pred_check
      _
    $region111: #{trocr_forward.1} parent=1 // pred_check_branch
      %1247 = sbr.rel (0) target = $region113
    $region112: #{trocr_forward.1} parent=1 // pred_region
      %1249 = dma.done [#allocation3], 16
    $region113: #{trocr_forward.1} parent=1 // pred_fallthru
      _
    // Predicated region
    $region114: #{trocr_forward.1} parent=1 // pred_check
      _
    $region115: #{trocr_forward.1} parent=1 // pred_check_branch
      %1251 = sbr.rel (0) target = $region117
    $region116: #{trocr_forward.1} parent=1 // pred_region
      _
    $region117: #{trocr_forward.1} parent=1 // pred_fallthru
      _
    %1252 = vsyncpa [#allocation3], 1

</llo_original>
